<compile_context>
chip_gen: v7x
topology: tpu7x:2x2x1
jax: 0.10.0
libtpu: 0.0.40
codegen_flags: <defaults>
</compile_context>

<pallas_src>
import functools

import jax
import jax.numpy as jnp
import numpy as np
from jax.experimental import pallas as pl
from jax.experimental.pallas import tpu as pltpu


def _spatial_attention_kernel(w_ref, x_ref, o_ref, *, C, H, W, K):
    """One batch element per grid step.

    w_ref : SMEM (2*K*K,) f32         conv weight, flat [c, kh, kw] order
    x_ref : VMEM (1, C, H+2P, W+2P)   zero-padded input block (P = K // 2)
    o_ref : VMEM (1, 1, H, W)         sigmoid(conv(concat(avg, max), w))
    """
    # ---- channel reduction (mean & max) on the padded grid.  The zero halo
    # of x reduces to avg == 0 and max == 0 in the halo, which is exactly the
    # zero padding the conv needs, so no in-kernel pad is required and every
    # conv tap below is a static slice.
    x0 = x_ref[0, 0].astype(jnp.float32)
    acc_sum = x0
    acc_max = x0
    for c in range(1, C):
        xc = x_ref[0, c].astype(jnp.float32)
        acc_sum = acc_sum + xc
        acc_max = jnp.maximum(acc_max, xc)
    feats = (acc_sum * jnp.float32(1.0 / C), acc_max)   # (avg_pad, max_pad)

    # ---- KxK conv, fully unrolled.  Row slice hoisted per kh (one sublane
    # shift); column slice per kw (one lane shift); weight scalar from SMEM.
    acc = jnp.zeros((H, W), jnp.float32)
    for c, feat in enumerate(feats):
        base = c * K * K
        for kh in range(K):
            rows = feat[kh:kh + H, :]                    # (H, W + 2P)
            for kw in range(K):
                w = w_ref[base + kh * K + kw]            # SMEM scalar read
                acc = acc + w * rows[:, kw:kw + W]

    # ---- sigmoid (one EUP exp); cast only at the final store.
    o_ref[0, 0] = (1.0 / (1.0 + jnp.exp(-acc))).astype(o_ref.dtype)


def spatial_attention_forward(x: jax.Array, conv_w: jax.Array,
                              *, kernel_size: int = 7) -> jax.Array:
    """x: (B, C, H, W); conv_w: (1, 2, K, K).  Returns (B, 1, H, W)."""
    assert kernel_size in (3, 7), "kernel size must be 3 or 7"
    B, C, H, W = x.shape
    K = kernel_size
    P = K // 2
    HP, WP = H + 2 * P, W + 2 * P

    # Wrapper-side zero pad (plain XLA) provides the conv halo; the kernel
    # then needs only static slices.  Layout plumbing, no compute hoisted.
    x_p = jnp.pad(x, ((0, 0), (0, 0), (P, P), (P, P)))
    w_flat = conv_w.astype(jnp.float32).reshape(-1)      # (2*K*K,) flat 1-D

    kernel = functools.partial(_spatial_attention_kernel, C=C, H=H, W=W, K=K)
    return pl.pallas_call(
        kernel,
        out_shape=jax.ShapeDtypeStruct((B, 1, H, W), x.dtype),
        grid=(B,),
        in_specs=[
            # 98 weight scalars -> SMEM (1-D flat to dodge 2-D SMEM padding).
            pl.BlockSpec(memory_space=pltpu.MemorySpace.SMEM),
            # Full (C, HP, WP) slab per batch element; trailing block dims
            # equal the full array dims so the (8, 128) rule is waived.
            pl.BlockSpec((1, C, HP, WP), lambda b: (b, 0, 0, 0)),
        ],
        out_specs=pl.BlockSpec((1, 1, H, W), lambda b: (b, 0, 0, 0)),
        compiler_params=pltpu.CompilerParams(
            dimension_semantics=("parallel",)),
    )(w_flat, x_p)


def _reference(x, conv_w, K):
    # Direct jnp transcription of the PyTorch module.
    avg = jnp.mean(x, axis=1, keepdims=True)
    mx = jnp.max(x, axis=1, keepdims=True)
    cat = jnp.concatenate([avg, mx], axis=1)
    y = jax.lax.conv_general_dilated(
        cat, conv_w, window_strides=(1, 1),
        padding=((K // 2, K // 2), (K // 2, K // 2)),
        dimension_numbers=("NCHW", "OIHW", "NCHW"),
        precision=jax.lax.Precision.HIGHEST)
    return jax.nn.sigmoid(y)


if __name__ == "__main__":
    B, C, H, W = 2, 4, 16, 16
    K = 7

    key = jax.random.PRNGKey(0)
    kx, kw = jax.random.split(key)
    x = jax.random.normal(kx, (B, C, H, W), dtype=jnp.float32)
    conv_w = jax.random.normal(kw, (1, 2, K, K), dtype=jnp.float32) * 0.1

    out = spatial_attention_forward(x, conv_w, kernel_size=K)
    out = jax.block_until_ready(out)
    assert out.shape == (B, 1, H, W), out.shape

    ref = _reference(x, conv_w, K)
    np.testing.assert_allclose(np.asarray(out), np.asarray(ref),
                               rtol=1e-4, atol=1e-5)
    print("KERNEL_OK")
</pallas_src>

<mosaic_0001>
module attributes {stable_mosaic.version = 11 : i64} {
  func.func @_spatial_attention_kernel(%arg0: i32, %arg1: memref<98xf32, #tpu.memory_space<smem>>, %arg2: memref<1x4x22x22xf32, #tpu.memory_space<vmem>>, %arg3: memref<1x1x16x16xf32, #tpu.memory_space<vmem>>) attributes {dimension_semantics = [#tpu.dimension_semantics<parallel>], iteration_bounds = array<i64: 2>, scalar_prefetch = 0 : i64, scratch_operands = 0 : i64, tpu.core_type = #tpu.core_type<tc>, window_params = [{transform_indices = @transform_0, window_bounds = array<i64: 98>}, {transform_indices = @transform_1, window_bounds = array<i64: 1, 4, 22, 22>}, {transform_indices = @transform_2, window_bounds = array<i64: 1, 1, 16, 16>}]} {
    %c0 = arith.constant 0 : index
    %c0_0 = arith.constant 0 : index
    %c0_1 = arith.constant 0 : index
    %c0_2 = arith.constant 0 : index
    %0 = vector.load %arg2[%c0, %c0_0, %c0_1, %c0_2] : memref<1x4x22x22xf32, #tpu.memory_space<vmem>>, vector<1x1x22x22xf32>
    %1 = vector.shape_cast %0 : vector<1x1x22x22xf32> to vector<22x22xf32>
    %c0_3 = arith.constant 0 : index
    %c1 = arith.constant 1 : index
    %c0_4 = arith.constant 0 : index
    %c0_5 = arith.constant 0 : index
    %2 = vector.load %arg2[%c0_3, %c1, %c0_4, %c0_5] : memref<1x4x22x22xf32, #tpu.memory_space<vmem>>, vector<1x1x22x22xf32>
    %3 = vector.shape_cast %2 : vector<1x1x22x22xf32> to vector<22x22xf32>
    %4 = arith.addf %1, %3 : vector<22x22xf32>
    %5 = arith.maximumf %1, %3 : vector<22x22xf32>
    %c0_6 = arith.constant 0 : index
    %c2 = arith.constant 2 : index
    %c0_7 = arith.constant 0 : index
    %c0_8 = arith.constant 0 : index
    %6 = vector.load %arg2[%c0_6, %c2, %c0_7, %c0_8] : memref<1x4x22x22xf32, #tpu.memory_space<vmem>>, vector<1x1x22x22xf32>
    %7 = vector.shape_cast %6 : vector<1x1x22x22xf32> to vector<22x22xf32>
    %8 = arith.addf %4, %7 : vector<22x22xf32>
    %9 = arith.maximumf %5, %7 : vector<22x22xf32>
    %c0_9 = arith.constant 0 : index
    %c3 = arith.constant 3 : index
    %c0_10 = arith.constant 0 : index
    %c0_11 = arith.constant 0 : index
    %10 = vector.load %arg2[%c0_9, %c3, %c0_10, %c0_11] : memref<1x4x22x22xf32, #tpu.memory_space<vmem>>, vector<1x1x22x22xf32>
    %11 = vector.shape_cast %10 : vector<1x1x22x22xf32> to vector<22x22xf32>
    %12 = arith.addf %8, %11 : vector<22x22xf32>
    %13 = arith.maximumf %9, %11 : vector<22x22xf32>
    %cst = arith.constant 2.500000e-01 : f32
    %14 = vector.broadcast %cst : f32 to vector<22x22xf32>
    %15 = arith.mulf %12, %14 : vector<22x22xf32>
    %cst_12 = arith.constant 0.000000e+00 : f32
    %16 = vector.broadcast %cst_12 : f32 to vector<16x16xf32>
    %17 = vector.extract_strided_slice %15 {offsets = [0, 0], sizes = [16, 22], strides = [1, 1]} : vector<22x22xf32> to vector<16x22xf32>
    %c0_13 = arith.constant 0 : index
    %18 = memref.load %arg1[%c0_13] : memref<98xf32, #tpu.memory_space<smem>>
    %19 = vector.extract_strided_slice %17 {offsets = [0, 0], sizes = [16, 16], strides = [1, 1]} : vector<16x22xf32> to vector<16x16xf32>
    %20 = vector.broadcast %18 : f32 to vector<16x16xf32>
    %21 = arith.mulf %20, %19 : vector<16x16xf32>
    %22 = arith.addf %16, %21 : vector<16x16xf32>
    %c1_14 = arith.constant 1 : index
    %23 = memref.load %arg1[%c1_14] : memref<98xf32, #tpu.memory_space<smem>>
    %24 = vector.extract_strided_slice %17 {offsets = [0, 1], sizes = [16, 16], strides = [1, 1]} : vector<16x22xf32> to vector<16x16xf32>
    %25 = vector.broadcast %23 : f32 to vector<16x16xf32>
    %26 = arith.mulf %25, %24 : vector<16x16xf32>
    %27 = arith.addf %22, %26 : vector<16x16xf32>
    %c2_15 = arith.constant 2 : index
    %28 = memref.load %arg1[%c2_15] : memref<98xf32, #tpu.memory_space<smem>>
    %29 = vector.extract_strided_slice %17 {offsets = [0, 2], sizes = [16, 16], strides = [1, 1]} : vector<16x22xf32> to vector<16x16xf32>
    %30 = vector.broadcast %28 : f32 to vector<16x16xf32>
    %31 = arith.mulf %30, %29 : vector<16x16xf32>
    %32 = arith.addf %27, %31 : vector<16x16xf32>
    %c3_16 = arith.constant 3 : index
    %33 = memref.load %arg1[%c3_16] : memref<98xf32, #tpu.memory_space<smem>>
    %34 = vector.extract_strided_slice %17 {offsets = [0, 3], sizes = [16, 16], strides = [1, 1]} : vector<16x22xf32> to vector<16x16xf32>
    %35 = vector.broadcast %33 : f32 to vector<16x16xf32>
    %36 = arith.mulf %35, %34 : vector<16x16xf32>
    %37 = arith.addf %32, %36 : vector<16x16xf32>
    %c4 = arith.constant 4 : index
    %38 = memref.load %arg1[%c4] : memref<98xf32, #tpu.memory_space<smem>>
    %39 = vector.extract_strided_slice %17 {offsets = [0, 4], sizes = [16, 16], strides = [1, 1]} : vector<16x22xf32> to vector<16x16xf32>
    %40 = vector.broadcast %38 : f32 to vector<16x16xf32>
    %41 = arith.mulf %40, %39 : vector<16x16xf32>
    %42 = arith.addf %37, %41 : vector<16x16xf32>
    %c5 = arith.constant 5 : index
    %43 = memref.load %arg1[%c5] : memref<98xf32, #tpu.memory_space<smem>>
    %44 = vector.extract_strided_slice %17 {offsets = [0, 5], sizes = [16, 16], strides = [1, 1]} : vector<16x22xf32> to vector<16x16xf32>
    %45 = vector.broadcast %43 : f32 to vector<16x16xf32>
    %46 = arith.mulf %45, %44 : vector<16x16xf32>
    %47 = arith.addf %42, %46 : vector<16x16xf32>
    %c6 = arith.constant 6 : index
    %48 = memref.load %arg1[%c6] : memref<98xf32, #tpu.memory_space<smem>>
    %49 = vector.extract_strided_slice %17 {offsets = [0, 6], sizes = [16, 16], strides = [1, 1]} : vector<16x22xf32> to vector<16x16xf32>
    %50 = vector.broadcast %48 : f32 to vector<16x16xf32>
    %51 = arith.mulf %50, %49 : vector<16x16xf32>
    %52 = arith.addf %47, %51 : vector<16x16xf32>
    %53 = vector.extract_strided_slice %15 {offsets = [1, 0], sizes = [16, 22], strides = [1, 1]} : vector<22x22xf32> to vector<16x22xf32>
    %c7 = arith.constant 7 : index
    %54 = memref.load %arg1[%c7] : memref<98xf32, #tpu.memory_space<smem>>
    %55 = vector.extract_strided_slice %53 {offsets = [0, 0], sizes = [16, 16], strides = [1, 1]} : vector<16x22xf32> to vector<16x16xf32>
    %56 = vector.broadcast %54 : f32 to vector<16x16xf32>
    %57 = arith.mulf %56, %55 : vector<16x16xf32>
    %58 = arith.addf %52, %57 : vector<16x16xf32>
    %c8 = arith.constant 8 : index
    %59 = memref.load %arg1[%c8] : memref<98xf32, #tpu.memory_space<smem>>
    %60 = vector.extract_strided_slice %53 {offsets = [0, 1], sizes = [16, 16], strides = [1, 1]} : vector<16x22xf32> to vector<16x16xf32>
    %61 = vector.broadcast %59 : f32 to vector<16x16xf32>
    %62 = arith.mulf %61, %60 : vector<16x16xf32>
    %63 = arith.addf %58, %62 : vector<16x16xf32>
    %c9 = arith.constant 9 : index
    %64 = memref.load %arg1[%c9] : memref<98xf32, #tpu.memory_space<smem>>
    %65 = vector.extract_strided_slice %53 {offsets = [0, 2], sizes = [16, 16], strides = [1, 1]} : vector<16x22xf32> to vector<16x16xf32>
    %66 = vector.broadcast %64 : f32 to vector<16x16xf32>
    %67 = arith.mulf %66, %65 : vector<16x16xf32>
    %68 = arith.addf %63, %67 : vector<16x16xf32>
    %c10 = arith.constant 10 : index
    %69 = memref.load %arg1[%c10] : memref<98xf32, #tpu.memory_space<smem>>
    %70 = vector.extract_strided_slice %53 {offsets = [0, 3], sizes = [16, 16], strides = [1, 1]} : vector<16x22xf32> to vector<16x16xf32>
    %71 = vector.broadcast %69 : f32 to vector<16x16xf32>
    %72 = arith.mulf %71, %70 : vector<16x16xf32>
    %73 = arith.addf %68, %72 : vector<16x16xf32>
    %c11 = arith.constant 11 : index
    %74 = memref.load %arg1[%c11] : memref<98xf32, #tpu.memory_space<smem>>
    %75 = vector.extract_strided_slice %53 {offsets = [0, 4], sizes = [16, 16], strides = [1, 1]} : vector<16x22xf32> to vector<16x16xf32>
    %76 = vector.broadcast %74 : f32 to vector<16x16xf32>
    %77 = arith.mulf %76, %75 : vector<16x16xf32>
    %78 = arith.addf %73, %77 : vector<16x16xf32>
    %c12 = arith.constant 12 : index
    %79 = memref.load %arg1[%c12] : memref<98xf32, #tpu.memory_space<smem>>
    %80 = vector.extract_strided_slice %53 {offsets = [0, 5], sizes = [16, 16], strides = [1, 1]} : vector<16x22xf32> to vector<16x16xf32>
    %81 = vector.broadcast %79 : f32 to vector<16x16xf32>
    %82 = arith.mulf %81, %80 : vector<16x16xf32>
    %83 = arith.addf %78, %82 : vector<16x16xf32>
    %c13 = arith.constant 13 : index
    %84 = memref.load %arg1[%c13] : memref<98xf32, #tpu.memory_space<smem>>
    %85 = vector.extract_strided_slice %53 {offsets = [0, 6], sizes = [16, 16], strides = [1, 1]} : vector<16x22xf32> to vector<16x16xf32>
    %86 = vector.broadcast %84 : f32 to vector<16x16xf32>
    %87 = arith.mulf %86, %85 : vector<16x16xf32>
    %88 = arith.addf %83, %87 : vector<16x16xf32>
    %89 = vector.extract_strided_slice %15 {offsets = [2, 0], sizes = [16, 22], strides = [1, 1]} : vector<22x22xf32> to vector<16x22xf32>
    %c14 = arith.constant 14 : index
    %90 = memref.load %arg1[%c14] : memref<98xf32, #tpu.memory_space<smem>>
    %91 = vector.extract_strided_slice %89 {offsets = [0, 0], sizes = [16, 16], strides = [1, 1]} : vector<16x22xf32> to vector<16x16xf32>
    %92 = vector.broadcast %90 : f32 to vector<16x16xf32>
    %93 = arith.mulf %92, %91 : vector<16x16xf32>
    %94 = arith.addf %88, %93 : vector<16x16xf32>
    %c15 = arith.constant 15 : index
    %95 = memref.load %arg1[%c15] : memref<98xf32, #tpu.memory_space<smem>>
    %96 = vector.extract_strided_slice %89 {offsets = [0, 1], sizes = [16, 16], strides = [1, 1]} : vector<16x22xf32> to vector<16x16xf32>
    %97 = vector.broadcast %95 : f32 to vector<16x16xf32>
    %98 = arith.mulf %97, %96 : vector<16x16xf32>
    %99 = arith.addf %94, %98 : vector<16x16xf32>
    %c16 = arith.constant 16 : index
    %100 = memref.load %arg1[%c16] : memref<98xf32, #tpu.memory_space<smem>>
    %101 = vector.extract_strided_slice %89 {offsets = [0, 2], sizes = [16, 16], strides = [1, 1]} : vector<16x22xf32> to vector<16x16xf32>
    %102 = vector.broadcast %100 : f32 to vector<16x16xf32>
    %103 = arith.mulf %102, %101 : vector<16x16xf32>
    %104 = arith.addf %99, %103 : vector<16x16xf32>
    %c17 = arith.constant 17 : index
    %105 = memref.load %arg1[%c17] : memref<98xf32, #tpu.memory_space<smem>>
    %106 = vector.extract_strided_slice %89 {offsets = [0, 3], sizes = [16, 16], strides = [1, 1]} : vector<16x22xf32> to vector<16x16xf32>
    %107 = vector.broadcast %105 : f32 to vector<16x16xf32>
    %108 = arith.mulf %107, %106 : vector<16x16xf32>
    %109 = arith.addf %104, %108 : vector<16x16xf32>
    %c18 = arith.constant 18 : index
    %110 = memref.load %arg1[%c18] : memref<98xf32, #tpu.memory_space<smem>>
    %111 = vector.extract_strided_slice %89 {offsets = [0, 4], sizes = [16, 16], strides = [1, 1]} : vector<16x22xf32> to vector<16x16xf32>
    %112 = vector.broadcast %110 : f32 to vector<16x16xf32>
    %113 = arith.mulf %112, %111 : vector<16x16xf32>
    %114 = arith.addf %109, %113 : vector<16x16xf32>
    %c19 = arith.constant 19 : index
    %115 = memref.load %arg1[%c19] : memref<98xf32, #tpu.memory_space<smem>>
    %116 = vector.extract_strided_slice %89 {offsets = [0, 5], sizes = [16, 16], strides = [1, 1]} : vector<16x22xf32> to vector<16x16xf32>
    %117 = vector.broadcast %115 : f32 to vector<16x16xf32>
    %118 = arith.mulf %117, %116 : vector<16x16xf32>
    %119 = arith.addf %114, %118 : vector<16x16xf32>
    %c20 = arith.constant 20 : index
    %120 = memref.load %arg1[%c20] : memref<98xf32, #tpu.memory_space<smem>>
    %121 = vector.extract_strided_slice %89 {offsets = [0, 6], sizes = [16, 16], strides = [1, 1]} : vector<16x22xf32> to vector<16x16xf32>
    %122 = vector.broadcast %120 : f32 to vector<16x16xf32>
    %123 = arith.mulf %122, %121 : vector<16x16xf32>
    %124 = arith.addf %119, %123 : vector<16x16xf32>
    %125 = vector.extract_strided_slice %15 {offsets = [3, 0], sizes = [16, 22], strides = [1, 1]} : vector<22x22xf32> to vector<16x22xf32>
    %c21 = arith.constant 21 : index
    %126 = memref.load %arg1[%c21] : memref<98xf32, #tpu.memory_space<smem>>
    %127 = vector.extract_strided_slice %125 {offsets = [0, 0], sizes = [16, 16], strides = [1, 1]} : vector<16x22xf32> to vector<16x16xf32>
    %128 = vector.broadcast %126 : f32 to vector<16x16xf32>
    %129 = arith.mulf %128, %127 : vector<16x16xf32>
    %130 = arith.addf %124, %129 : vector<16x16xf32>
    %c22 = arith.constant 22 : index
    %131 = memref.load %arg1[%c22] : memref<98xf32, #tpu.memory_space<smem>>
    %132 = vector.extract_strided_slice %125 {offsets = [0, 1], sizes = [16, 16], strides = [1, 1]} : vector<16x22xf32> to vector<16x16xf32>
    %133 = vector.broadcast %131 : f32 to vector<16x16xf32>
    %134 = arith.mulf %133, %132 : vector<16x16xf32>
    %135 = arith.addf %130, %134 : vector<16x16xf32>
    %c23 = arith.constant 23 : index
    %136 = memref.load %arg1[%c23] : memref<98xf32, #tpu.memory_space<smem>>
    %137 = vector.extract_strided_slice %125 {offsets = [0, 2], sizes = [16, 16], strides = [1, 1]} : vector<16x22xf32> to vector<16x16xf32>
    %138 = vector.broadcast %136 : f32 to vector<16x16xf32>
    %139 = arith.mulf %138, %137 : vector<16x16xf32>
    %140 = arith.addf %135, %139 : vector<16x16xf32>
    %c24 = arith.constant 24 : index
    %141 = memref.load %arg1[%c24] : memref<98xf32, #tpu.memory_space<smem>>
    %142 = vector.extract_strided_slice %125 {offsets = [0, 3], sizes = [16, 16], strides = [1, 1]} : vector<16x22xf32> to vector<16x16xf32>
    %143 = vector.broadcast %141 : f32 to vector<16x16xf32>
    %144 = arith.mulf %143, %142 : vector<16x16xf32>
    %145 = arith.addf %140, %144 : vector<16x16xf32>
    %c25 = arith.constant 25 : index
    %146 = memref.load %arg1[%c25] : memref<98xf32, #tpu.memory_space<smem>>
    %147 = vector.extract_strided_slice %125 {offsets = [0, 4], sizes = [16, 16], strides = [1, 1]} : vector<16x22xf32> to vector<16x16xf32>
    %148 = vector.broadcast %146 : f32 to vector<16x16xf32>
    %149 = arith.mulf %148, %147 : vector<16x16xf32>
    %150 = arith.addf %145, %149 : vector<16x16xf32>
    %c26 = arith.constant 26 : index
    %151 = memref.load %arg1[%c26] : memref<98xf32, #tpu.memory_space<smem>>
    %152 = vector.extract_strided_slice %125 {offsets = [0, 5], sizes = [16, 16], strides = [1, 1]} : vector<16x22xf32> to vector<16x16xf32>
    %153 = vector.broadcast %151 : f32 to vector<16x16xf32>
    %154 = arith.mulf %153, %152 : vector<16x16xf32>
    %155 = arith.addf %150, %154 : vector<16x16xf32>
    %c27 = arith.constant 27 : index
    %156 = memref.load %arg1[%c27] : memref<98xf32, #tpu.memory_space<smem>>
    %157 = vector.extract_strided_slice %125 {offsets = [0, 6], sizes = [16, 16], strides = [1, 1]} : vector<16x22xf32> to vector<16x16xf32>
    %158 = vector.broadcast %156 : f32 to vector<16x16xf32>
    %159 = arith.mulf %158, %157 : vector<16x16xf32>
    %160 = arith.addf %155, %159 : vector<16x16xf32>
    %161 = vector.extract_strided_slice %15 {offsets = [4, 0], sizes = [16, 22], strides = [1, 1]} : vector<22x22xf32> to vector<16x22xf32>
    %c28 = arith.constant 28 : index
    %162 = memref.load %arg1[%c28] : memref<98xf32, #tpu.memory_space<smem>>
    %163 = vector.extract_strided_slice %161 {offsets = [0, 0], sizes = [16, 16], strides = [1, 1]} : vector<16x22xf32> to vector<16x16xf32>
    %164 = vector.broadcast %162 : f32 to vector<16x16xf32>
    %165 = arith.mulf %164, %163 : vector<16x16xf32>
    %166 = arith.addf %160, %165 : vector<16x16xf32>
    %c29 = arith.constant 29 : index
    %167 = memref.load %arg1[%c29] : memref<98xf32, #tpu.memory_space<smem>>
    %168 = vector.extract_strided_slice %161 {offsets = [0, 1], sizes = [16, 16], strides = [1, 1]} : vector<16x22xf32> to vector<16x16xf32>
    %169 = vector.broadcast %167 : f32 to vector<16x16xf32>
    %170 = arith.mulf %169, %168 : vector<16x16xf32>
    %171 = arith.addf %166, %170 : vector<16x16xf32>
    %c30 = arith.constant 30 : index
    %172 = memref.load %arg1[%c30] : memref<98xf32, #tpu.memory_space<smem>>
    %173 = vector.extract_strided_slice %161 {offsets = [0, 2], sizes = [16, 16], strides = [1, 1]} : vector<16x22xf32> to vector<16x16xf32>
    %174 = vector.broadcast %172 : f32 to vector<16x16xf32>
    %175 = arith.mulf %174, %173 : vector<16x16xf32>
    %176 = arith.addf %171, %175 : vector<16x16xf32>
    %c31 = arith.constant 31 : index
    %177 = memref.load %arg1[%c31] : memref<98xf32, #tpu.memory_space<smem>>
    %178 = vector.extract_strided_slice %161 {offsets = [0, 3], sizes = [16, 16], strides = [1, 1]} : vector<16x22xf32> to vector<16x16xf32>
    %179 = vector.broadcast %177 : f32 to vector<16x16xf32>
    %180 = arith.mulf %179, %178 : vector<16x16xf32>
    %181 = arith.addf %176, %180 : vector<16x16xf32>
    %c32 = arith.constant 32 : index
    %182 = memref.load %arg1[%c32] : memref<98xf32, #tpu.memory_space<smem>>
    %183 = vector.extract_strided_slice %161 {offsets = [0, 4], sizes = [16, 16], strides = [1, 1]} : vector<16x22xf32> to vector<16x16xf32>
    %184 = vector.broadcast %182 : f32 to vector<16x16xf32>
    %185 = arith.mulf %184, %183 : vector<16x16xf32>
    %186 = arith.addf %181, %185 : vector<16x16xf32>
    %c33 = arith.constant 33 : index
    %187 = memref.load %arg1[%c33] : memref<98xf32, #tpu.memory_space<smem>>
    %188 = vector.extract_strided_slice %161 {offsets = [0, 5], sizes = [16, 16], strides = [1, 1]} : vector<16x22xf32> to vector<16x16xf32>
    %189 = vector.broadcast %187 : f32 to vector<16x16xf32>
    %190 = arith.mulf %189, %188 : vector<16x16xf32>
    %191 = arith.addf %186, %190 : vector<16x16xf32>
    %c34 = arith.constant 34 : index
    %192 = memref.load %arg1[%c34] : memref<98xf32, #tpu.memory_space<smem>>
    %193 = vector.extract_strided_slice %161 {offsets = [0, 6], sizes = [16, 16], strides = [1, 1]} : vector<16x22xf32> to vector<16x16xf32>
    %194 = vector.broadcast %192 : f32 to vector<16x16xf32>
    %195 = arith.mulf %194, %193 : vector<16x16xf32>
    %196 = arith.addf %191, %195 : vector<16x16xf32>
    %197 = vector.extract_strided_slice %15 {offsets = [5, 0], sizes = [16, 22], strides = [1, 1]} : vector<22x22xf32> to vector<16x22xf32>
    %c35 = arith.constant 35 : index
    %198 = memref.load %arg1[%c35] : memref<98xf32, #tpu.memory_space<smem>>
    %199 = vector.extract_strided_slice %197 {offsets = [0, 0], sizes = [16, 16], strides = [1, 1]} : vector<16x22xf32> to vector<16x16xf32>
    %200 = vector.broadcast %198 : f32 to vector<16x16xf32>
    %201 = arith.mulf %200, %199 : vector<16x16xf32>
    %202 = arith.addf %196, %201 : vector<16x16xf32>
    %c36 = arith.constant 36 : index
    %203 = memref.load %arg1[%c36] : memref<98xf32, #tpu.memory_space<smem>>
    %204 = vector.extract_strided_slice %197 {offsets = [0, 1], sizes = [16, 16], strides = [1, 1]} : vector<16x22xf32> to vector<16x16xf32>
    %205 = vector.broadcast %203 : f32 to vector<16x16xf32>
    %206 = arith.mulf %205, %204 : vector<16x16xf32>
    %207 = arith.addf %202, %206 : vector<16x16xf32>
    %c37 = arith.constant 37 : index
    %208 = memref.load %arg1[%c37] : memref<98xf32, #tpu.memory_space<smem>>
    %209 = vector.extract_strided_slice %197 {offsets = [0, 2], sizes = [16, 16], strides = [1, 1]} : vector<16x22xf32> to vector<16x16xf32>
    %210 = vector.broadcast %208 : f32 to vector<16x16xf32>
    %211 = arith.mulf %210, %209 : vector<16x16xf32>
    %212 = arith.addf %207, %211 : vector<16x16xf32>
    %c38 = arith.constant 38 : index
    %213 = memref.load %arg1[%c38] : memref<98xf32, #tpu.memory_space<smem>>
    %214 = vector.extract_strided_slice %197 {offsets = [0, 3], sizes = [16, 16], strides = [1, 1]} : vector<16x22xf32> to vector<16x16xf32>
    %215 = vector.broadcast %213 : f32 to vector<16x16xf32>
    %216 = arith.mulf %215, %214 : vector<16x16xf32>
    %217 = arith.addf %212, %216 : vector<16x16xf32>
    %c39 = arith.constant 39 : index
    %218 = memref.load %arg1[%c39] : memref<98xf32, #tpu.memory_space<smem>>
    %219 = vector.extract_strided_slice %197 {offsets = [0, 4], sizes = [16, 16], strides = [1, 1]} : vector<16x22xf32> to vector<16x16xf32>
    %220 = vector.broadcast %218 : f32 to vector<16x16xf32>
    %221 = arith.mulf %220, %219 : vector<16x16xf32>
    %222 = arith.addf %217, %221 : vector<16x16xf32>
    %c40 = arith.constant 40 : index
    %223 = memref.load %arg1[%c40] : memref<98xf32, #tpu.memory_space<smem>>
    %224 = vector.extract_strided_slice %197 {offsets = [0, 5], sizes = [16, 16], strides = [1, 1]} : vector<16x22xf32> to vector<16x16xf32>
    %225 = vector.broadcast %223 : f32 to vector<16x16xf32>
    %226 = arith.mulf %225, %224 : vector<16x16xf32>
    %227 = arith.addf %222, %226 : vector<16x16xf32>
    %c41 = arith.constant 41 : index
    %228 = memref.load %arg1[%c41] : memref<98xf32, #tpu.memory_space<smem>>
    %229 = vector.extract_strided_slice %197 {offsets = [0, 6], sizes = [16, 16], strides = [1, 1]} : vector<16x22xf32> to vector<16x16xf32>
    %230 = vector.broadcast %228 : f32 to vector<16x16xf32>
    %231 = arith.mulf %230, %229 : vector<16x16xf32>
    %232 = arith.addf %227, %231 : vector<16x16xf32>
    %233 = vector.extract_strided_slice %15 {offsets = [6, 0], sizes = [16, 22], strides = [1, 1]} : vector<22x22xf32> to vector<16x22xf32>
    %c42 = arith.constant 42 : index
    %234 = memref.load %arg1[%c42] : memref<98xf32, #tpu.memory_space<smem>>
    %235 = vector.extract_strided_slice %233 {offsets = [0, 0], sizes = [16, 16], strides = [1, 1]} : vector<16x22xf32> to vector<16x16xf32>
    %236 = vector.broadcast %234 : f32 to vector<16x16xf32>
    %237 = arith.mulf %236, %235 : vector<16x16xf32>
    %238 = arith.addf %232, %237 : vector<16x16xf32>
    %c43 = arith.constant 43 : index
    %239 = memref.load %arg1[%c43] : memref<98xf32, #tpu.memory_space<smem>>
    %240 = vector.extract_strided_slice %233 {offsets = [0, 1], sizes = [16, 16], strides = [1, 1]} : vector<16x22xf32> to vector<16x16xf32>
    %241 = vector.broadcast %239 : f32 to vector<16x16xf32>
    %242 = arith.mulf %241, %240 : vector<16x16xf32>
    %243 = arith.addf %238, %242 : vector<16x16xf32>
    %c44 = arith.constant 44 : index
    %244 = memref.load %arg1[%c44] : memref<98xf32, #tpu.memory_space<smem>>
    %245 = vector.extract_strided_slice %233 {offsets = [0, 2], sizes = [16, 16], strides = [1, 1]} : vector<16x22xf32> to vector<16x16xf32>
    %246 = vector.broadcast %244 : f32 to vector<16x16xf32>
    %247 = arith.mulf %246, %245 : vector<16x16xf32>
    %248 = arith.addf %243, %247 : vector<16x16xf32>
    %c45 = arith.constant 45 : index
    %249 = memref.load %arg1[%c45] : memref<98xf32, #tpu.memory_space<smem>>
    %250 = vector.extract_strided_slice %233 {offsets = [0, 3], sizes = [16, 16], strides = [1, 1]} : vector<16x22xf32> to vector<16x16xf32>
    %251 = vector.broadcast %249 : f32 to vector<16x16xf32>
    %252 = arith.mulf %251, %250 : vector<16x16xf32>
    %253 = arith.addf %248, %252 : vector<16x16xf32>
    %c46 = arith.constant 46 : index
    %254 = memref.load %arg1[%c46] : memref<98xf32, #tpu.memory_space<smem>>
    %255 = vector.extract_strided_slice %233 {offsets = [0, 4], sizes = [16, 16], strides = [1, 1]} : vector<16x22xf32> to vector<16x16xf32>
    %256 = vector.broadcast %254 : f32 to vector<16x16xf32>
    %257 = arith.mulf %256, %255 : vector<16x16xf32>
    %258 = arith.addf %253, %257 : vector<16x16xf32>
    %c47 = arith.constant 47 : index
    %259 = memref.load %arg1[%c47] : memref<98xf32, #tpu.memory_space<smem>>
    %260 = vector.extract_strided_slice %233 {offsets = [0, 5], sizes = [16, 16], strides = [1, 1]} : vector<16x22xf32> to vector<16x16xf32>
    %261 = vector.broadcast %259 : f32 to vector<16x16xf32>
    %262 = arith.mulf %261, %260 : vector<16x16xf32>
    %263 = arith.addf %258, %262 : vector<16x16xf32>
    %c48 = arith.constant 48 : index
    %264 = memref.load %arg1[%c48] : memref<98xf32, #tpu.memory_space<smem>>
    %265 = vector.extract_strided_slice %233 {offsets = [0, 6], sizes = [16, 16], strides = [1, 1]} : vector<16x22xf32> to vector<16x16xf32>
    %266 = vector.broadcast %264 : f32 to vector<16x16xf32>
    %267 = arith.mulf %266, %265 : vector<16x16xf32>
    %268 = arith.addf %263, %267 : vector<16x16xf32>
    %269 = vector.extract_strided_slice %13 {offsets = [0, 0], sizes = [16, 22], strides = [1, 1]} : vector<22x22xf32> to vector<16x22xf32>
    %c49 = arith.constant 49 : index
    %270 = memref.load %arg1[%c49] : memref<98xf32, #tpu.memory_space<smem>>
    %271 = vector.extract_strided_slice %269 {offsets = [0, 0], sizes = [16, 16], strides = [1, 1]} : vector<16x22xf32> to vector<16x16xf32>
    %272 = vector.broadcast %270 : f32 to vector<16x16xf32>
    %273 = arith.mulf %272, %271 : vector<16x16xf32>
    %274 = arith.addf %268, %273 : vector<16x16xf32>
    %c50 = arith.constant 50 : index
    %275 = memref.load %arg1[%c50] : memref<98xf32, #tpu.memory_space<smem>>
    %276 = vector.extract_strided_slice %269 {offsets = [0, 1], sizes = [16, 16], strides = [1, 1]} : vector<16x22xf32> to vector<16x16xf32>
    %277 = vector.broadcast %275 : f32 to vector<16x16xf32>
    %278 = arith.mulf %277, %276 : vector<16x16xf32>
    %279 = arith.addf %274, %278 : vector<16x16xf32>
    %c51 = arith.constant 51 : index
    %280 = memref.load %arg1[%c51] : memref<98xf32, #tpu.memory_space<smem>>
    %281 = vector.extract_strided_slice %269 {offsets = [0, 2], sizes = [16, 16], strides = [1, 1]} : vector<16x22xf32> to vector<16x16xf32>
    %282 = vector.broadcast %280 : f32 to vector<16x16xf32>
    %283 = arith.mulf %282, %281 : vector<16x16xf32>
    %284 = arith.addf %279, %283 : vector<16x16xf32>
    %c52 = arith.constant 52 : index
    %285 = memref.load %arg1[%c52] : memref<98xf32, #tpu.memory_space<smem>>
    %286 = vector.extract_strided_slice %269 {offsets = [0, 3], sizes = [16, 16], strides = [1, 1]} : vector<16x22xf32> to vector<16x16xf32>
    %287 = vector.broadcast %285 : f32 to vector<16x16xf32>
    %288 = arith.mulf %287, %286 : vector<16x16xf32>
    %289 = arith.addf %284, %288 : vector<16x16xf32>
    %c53 = arith.constant 53 : index
    %290 = memref.load %arg1[%c53] : memref<98xf32, #tpu.memory_space<smem>>
    %291 = vector.extract_strided_slice %269 {offsets = [0, 4], sizes = [16, 16], strides = [1, 1]} : vector<16x22xf32> to vector<16x16xf32>
    %292 = vector.broadcast %290 : f32 to vector<16x16xf32>
    %293 = arith.mulf %292, %291 : vector<16x16xf32>
    %294 = arith.addf %289, %293 : vector<16x16xf32>
    %c54 = arith.constant 54 : index
    %295 = memref.load %arg1[%c54] : memref<98xf32, #tpu.memory_space<smem>>
    %296 = vector.extract_strided_slice %269 {offsets = [0, 5], sizes = [16, 16], strides = [1, 1]} : vector<16x22xf32> to vector<16x16xf32>
    %297 = vector.broadcast %295 : f32 to vector<16x16xf32>
    %298 = arith.mulf %297, %296 : vector<16x16xf32>
    %299 = arith.addf %294, %298 : vector<16x16xf32>
    %c55 = arith.constant 55 : index
    %300 = memref.load %arg1[%c55] : memref<98xf32, #tpu.memory_space<smem>>
    %301 = vector.extract_strided_slice %269 {offsets = [0, 6], sizes = [16, 16], strides = [1, 1]} : vector<16x22xf32> to vector<16x16xf32>
    %302 = vector.broadcast %300 : f32 to vector<16x16xf32>
    %303 = arith.mulf %302, %301 : vector<16x16xf32>
    %304 = arith.addf %299, %303 : vector<16x16xf32>
    %305 = vector.extract_strided_slice %13 {offsets = [1, 0], sizes = [16, 22], strides = [1, 1]} : vector<22x22xf32> to vector<16x22xf32>
    %c56 = arith.constant 56 : index
    %306 = memref.load %arg1[%c56] : memref<98xf32, #tpu.memory_space<smem>>
    %307 = vector.extract_strided_slice %305 {offsets = [0, 0], sizes = [16, 16], strides = [1, 1]} : vector<16x22xf32> to vector<16x16xf32>
    %308 = vector.broadcast %306 : f32 to vector<16x16xf32>
    %309 = arith.mulf %308, %307 : vector<16x16xf32>
    %310 = arith.addf %304, %309 : vector<16x16xf32>
    %c57 = arith.constant 57 : index
    %311 = memref.load %arg1[%c57] : memref<98xf32, #tpu.memory_space<smem>>
    %312 = vector.extract_strided_slice %305 {offsets = [0, 1], sizes = [16, 16], strides = [1, 1]} : vector<16x22xf32> to vector<16x16xf32>
    %313 = vector.broadcast %311 : f32 to vector<16x16xf32>
    %314 = arith.mulf %313, %312 : vector<16x16xf32>
    %315 = arith.addf %310, %314 : vector<16x16xf32>
    %c58 = arith.constant 58 : index
    %316 = memref.load %arg1[%c58] : memref<98xf32, #tpu.memory_space<smem>>
    %317 = vector.extract_strided_slice %305 {offsets = [0, 2], sizes = [16, 16], strides = [1, 1]} : vector<16x22xf32> to vector<16x16xf32>
    %318 = vector.broadcast %316 : f32 to vector<16x16xf32>
    %319 = arith.mulf %318, %317 : vector<16x16xf32>
    %320 = arith.addf %315, %319 : vector<16x16xf32>
    %c59 = arith.constant 59 : index
    %321 = memref.load %arg1[%c59] : memref<98xf32, #tpu.memory_space<smem>>
    %322 = vector.extract_strided_slice %305 {offsets = [0, 3], sizes = [16, 16], strides = [1, 1]} : vector<16x22xf32> to vector<16x16xf32>
    %323 = vector.broadcast %321 : f32 to vector<16x16xf32>
    %324 = arith.mulf %323, %322 : vector<16x16xf32>
    %325 = arith.addf %320, %324 : vector<16x16xf32>
    %c60 = arith.constant 60 : index
    %326 = memref.load %arg1[%c60] : memref<98xf32, #tpu.memory_space<smem>>
    %327 = vector.extract_strided_slice %305 {offsets = [0, 4], sizes = [16, 16], strides = [1, 1]} : vector<16x22xf32> to vector<16x16xf32>
    %328 = vector.broadcast %326 : f32 to vector<16x16xf32>
    %329 = arith.mulf %328, %327 : vector<16x16xf32>
    %330 = arith.addf %325, %329 : vector<16x16xf32>
    %c61 = arith.constant 61 : index
    %331 = memref.load %arg1[%c61] : memref<98xf32, #tpu.memory_space<smem>>
    %332 = vector.extract_strided_slice %305 {offsets = [0, 5], sizes = [16, 16], strides = [1, 1]} : vector<16x22xf32> to vector<16x16xf32>
    %333 = vector.broadcast %331 : f32 to vector<16x16xf32>
    %334 = arith.mulf %333, %332 : vector<16x16xf32>
    %335 = arith.addf %330, %334 : vector<16x16xf32>
    %c62 = arith.constant 62 : index
    %336 = memref.load %arg1[%c62] : memref<98xf32, #tpu.memory_space<smem>>
    %337 = vector.extract_strided_slice %305 {offsets = [0, 6], sizes = [16, 16], strides = [1, 1]} : vector<16x22xf32> to vector<16x16xf32>
    %338 = vector.broadcast %336 : f32 to vector<16x16xf32>
    %339 = arith.mulf %338, %337 : vector<16x16xf32>
    %340 = arith.addf %335, %339 : vector<16x16xf32>
    %341 = vector.extract_strided_slice %13 {offsets = [2, 0], sizes = [16, 22], strides = [1, 1]} : vector<22x22xf32> to vector<16x22xf32>
    %c63 = arith.constant 63 : index
    %342 = memref.load %arg1[%c63] : memref<98xf32, #tpu.memory_space<smem>>
    %343 = vector.extract_strided_slice %341 {offsets = [0, 0], sizes = [16, 16], strides = [1, 1]} : vector<16x22xf32> to vector<16x16xf32>
    %344 = vector.broadcast %342 : f32 to vector<16x16xf32>
    %345 = arith.mulf %344, %343 : vector<16x16xf32>
    %346 = arith.addf %340, %345 : vector<16x16xf32>
    %c64 = arith.constant 64 : index
    %347 = memref.load %arg1[%c64] : memref<98xf32, #tpu.memory_space<smem>>
    %348 = vector.extract_strided_slice %341 {offsets = [0, 1], sizes = [16, 16], strides = [1, 1]} : vector<16x22xf32> to vector<16x16xf32>
    %349 = vector.broadcast %347 : f32 to vector<16x16xf32>
    %350 = arith.mulf %349, %348 : vector<16x16xf32>
    %351 = arith.addf %346, %350 : vector<16x16xf32>
    %c65 = arith.constant 65 : index
    %352 = memref.load %arg1[%c65] : memref<98xf32, #tpu.memory_space<smem>>
    %353 = vector.extract_strided_slice %341 {offsets = [0, 2], sizes = [16, 16], strides = [1, 1]} : vector<16x22xf32> to vector<16x16xf32>
    %354 = vector.broadcast %352 : f32 to vector<16x16xf32>
    %355 = arith.mulf %354, %353 : vector<16x16xf32>
    %356 = arith.addf %351, %355 : vector<16x16xf32>
    %c66 = arith.constant 66 : index
    %357 = memref.load %arg1[%c66] : memref<98xf32, #tpu.memory_space<smem>>
    %358 = vector.extract_strided_slice %341 {offsets = [0, 3], sizes = [16, 16], strides = [1, 1]} : vector<16x22xf32> to vector<16x16xf32>
    %359 = vector.broadcast %357 : f32 to vector<16x16xf32>
    %360 = arith.mulf %359, %358 : vector<16x16xf32>
    %361 = arith.addf %356, %360 : vector<16x16xf32>
    %c67 = arith.constant 67 : index
    %362 = memref.load %arg1[%c67] : memref<98xf32, #tpu.memory_space<smem>>
    %363 = vector.extract_strided_slice %341 {offsets = [0, 4], sizes = [16, 16], strides = [1, 1]} : vector<16x22xf32> to vector<16x16xf32>
    %364 = vector.broadcast %362 : f32 to vector<16x16xf32>
    %365 = arith.mulf %364, %363 : vector<16x16xf32>
    %366 = arith.addf %361, %365 : vector<16x16xf32>
    %c68 = arith.constant 68 : index
    %367 = memref.load %arg1[%c68] : memref<98xf32, #tpu.memory_space<smem>>
    %368 = vector.extract_strided_slice %341 {offsets = [0, 5], sizes = [16, 16], strides = [1, 1]} : vector<16x22xf32> to vector<16x16xf32>
    %369 = vector.broadcast %367 : f32 to vector<16x16xf32>
    %370 = arith.mulf %369, %368 : vector<16x16xf32>
    %371 = arith.addf %366, %370 : vector<16x16xf32>
    %c69 = arith.constant 69 : index
    %372 = memref.load %arg1[%c69] : memref<98xf32, #tpu.memory_space<smem>>
    %373 = vector.extract_strided_slice %341 {offsets = [0, 6], sizes = [16, 16], strides = [1, 1]} : vector<16x22xf32> to vector<16x16xf32>
    %374 = vector.broadcast %372 : f32 to vector<16x16xf32>
    %375 = arith.mulf %374, %373 : vector<16x16xf32>
    %376 = arith.addf %371, %375 : vector<16x16xf32>
    %377 = vector.extract_strided_slice %13 {offsets = [3, 0], sizes = [16, 22], strides = [1, 1]} : vector<22x22xf32> to vector<16x22xf32>
    %c70 = arith.constant 70 : index
    %378 = memref.load %arg1[%c70] : memref<98xf32, #tpu.memory_space<smem>>
    %379 = vector.extract_strided_slice %377 {offsets = [0, 0], sizes = [16, 16], strides = [1, 1]} : vector<16x22xf32> to vector<16x16xf32>
    %380 = vector.broadcast %378 : f32 to vector<16x16xf32>
    %381 = arith.mulf %380, %379 : vector<16x16xf32>
    %382 = arith.addf %376, %381 : vector<16x16xf32>
    %c71 = arith.constant 71 : index
    %383 = memref.load %arg1[%c71] : memref<98xf32, #tpu.memory_space<smem>>
    %384 = vector.extract_strided_slice %377 {offsets = [0, 1], sizes = [16, 16], strides = [1, 1]} : vector<16x22xf32> to vector<16x16xf32>
    %385 = vector.broadcast %383 : f32 to vector<16x16xf32>
    %386 = arith.mulf %385, %384 : vector<16x16xf32>
    %387 = arith.addf %382, %386 : vector<16x16xf32>
    %c72 = arith.constant 72 : index
    %388 = memref.load %arg1[%c72] : memref<98xf32, #tpu.memory_space<smem>>
    %389 = vector.extract_strided_slice %377 {offsets = [0, 2], sizes = [16, 16], strides = [1, 1]} : vector<16x22xf32> to vector<16x16xf32>
    %390 = vector.broadcast %388 : f32 to vector<16x16xf32>
    %391 = arith.mulf %390, %389 : vector<16x16xf32>
    %392 = arith.addf %387, %391 : vector<16x16xf32>
    %c73 = arith.constant 73 : index
    %393 = memref.load %arg1[%c73] : memref<98xf32, #tpu.memory_space<smem>>
    %394 = vector.extract_strided_slice %377 {offsets = [0, 3], sizes = [16, 16], strides = [1, 1]} : vector<16x22xf32> to vector<16x16xf32>
    %395 = vector.broadcast %393 : f32 to vector<16x16xf32>
    %396 = arith.mulf %395, %394 : vector<16x16xf32>
    %397 = arith.addf %392, %396 : vector<16x16xf32>
    %c74 = arith.constant 74 : index
    %398 = memref.load %arg1[%c74] : memref<98xf32, #tpu.memory_space<smem>>
    %399 = vector.extract_strided_slice %377 {offsets = [0, 4], sizes = [16, 16], strides = [1, 1]} : vector<16x22xf32> to vector<16x16xf32>
    %400 = vector.broadcast %398 : f32 to vector<16x16xf32>
    %401 = arith.mulf %400, %399 : vector<16x16xf32>
    %402 = arith.addf %397, %401 : vector<16x16xf32>
    %c75 = arith.constant 75 : index
    %403 = memref.load %arg1[%c75] : memref<98xf32, #tpu.memory_space<smem>>
    %404 = vector.extract_strided_slice %377 {offsets = [0, 5], sizes = [16, 16], strides = [1, 1]} : vector<16x22xf32> to vector<16x16xf32>
    %405 = vector.broadcast %403 : f32 to vector<16x16xf32>
    %406 = arith.mulf %405, %404 : vector<16x16xf32>
    %407 = arith.addf %402, %406 : vector<16x16xf32>
    %c76 = arith.constant 76 : index
    %408 = memref.load %arg1[%c76] : memref<98xf32, #tpu.memory_space<smem>>
    %409 = vector.extract_strided_slice %377 {offsets = [0, 6], sizes = [16, 16], strides = [1, 1]} : vector<16x22xf32> to vector<16x16xf32>
    %410 = vector.broadcast %408 : f32 to vector<16x16xf32>
    %411 = arith.mulf %410, %409 : vector<16x16xf32>
    %412 = arith.addf %407, %411 : vector<16x16xf32>
    %413 = vector.extract_strided_slice %13 {offsets = [4, 0], sizes = [16, 22], strides = [1, 1]} : vector<22x22xf32> to vector<16x22xf32>
    %c77 = arith.constant 77 : index
    %414 = memref.load %arg1[%c77] : memref<98xf32, #tpu.memory_space<smem>>
    %415 = vector.extract_strided_slice %413 {offsets = [0, 0], sizes = [16, 16], strides = [1, 1]} : vector<16x22xf32> to vector<16x16xf32>
    %416 = vector.broadcast %414 : f32 to vector<16x16xf32>
    %417 = arith.mulf %416, %415 : vector<16x16xf32>
    %418 = arith.addf %412, %417 : vector<16x16xf32>
    %c78 = arith.constant 78 : index
    %419 = memref.load %arg1[%c78] : memref<98xf32, #tpu.memory_space<smem>>
    %420 = vector.extract_strided_slice %413 {offsets = [0, 1], sizes = [16, 16], strides = [1, 1]} : vector<16x22xf32> to vector<16x16xf32>
    %421 = vector.broadcast %419 : f32 to vector<16x16xf32>
    %422 = arith.mulf %421, %420 : vector<16x16xf32>
    %423 = arith.addf %418, %422 : vector<16x16xf32>
    %c79 = arith.constant 79 : index
    %424 = memref.load %arg1[%c79] : memref<98xf32, #tpu.memory_space<smem>>
    %425 = vector.extract_strided_slice %413 {offsets = [0, 2], sizes = [16, 16], strides = [1, 1]} : vector<16x22xf32> to vector<16x16xf32>
    %426 = vector.broadcast %424 : f32 to vector<16x16xf32>
    %427 = arith.mulf %426, %425 : vector<16x16xf32>
    %428 = arith.addf %423, %427 : vector<16x16xf32>
    %c80 = arith.constant 80 : index
    %429 = memref.load %arg1[%c80] : memref<98xf32, #tpu.memory_space<smem>>
    %430 = vector.extract_strided_slice %413 {offsets = [0, 3], sizes = [16, 16], strides = [1, 1]} : vector<16x22xf32> to vector<16x16xf32>
    %431 = vector.broadcast %429 : f32 to vector<16x16xf32>
    %432 = arith.mulf %431, %430 : vector<16x16xf32>
    %433 = arith.addf %428, %432 : vector<16x16xf32>
    %c81 = arith.constant 81 : index
    %434 = memref.load %arg1[%c81] : memref<98xf32, #tpu.memory_space<smem>>
    %435 = vector.extract_strided_slice %413 {offsets = [0, 4], sizes = [16, 16], strides = [1, 1]} : vector<16x22xf32> to vector<16x16xf32>
    %436 = vector.broadcast %434 : f32 to vector<16x16xf32>
    %437 = arith.mulf %436, %435 : vector<16x16xf32>
    %438 = arith.addf %433, %437 : vector<16x16xf32>
    %c82 = arith.constant 82 : index
    %439 = memref.load %arg1[%c82] : memref<98xf32, #tpu.memory_space<smem>>
    %440 = vector.extract_strided_slice %413 {offsets = [0, 5], sizes = [16, 16], strides = [1, 1]} : vector<16x22xf32> to vector<16x16xf32>
    %441 = vector.broadcast %439 : f32 to vector<16x16xf32>
    %442 = arith.mulf %441, %440 : vector<16x16xf32>
    %443 = arith.addf %438, %442 : vector<16x16xf32>
    %c83 = arith.constant 83 : index
    %444 = memref.load %arg1[%c83] : memref<98xf32, #tpu.memory_space<smem>>
    %445 = vector.extract_strided_slice %413 {offsets = [0, 6], sizes = [16, 16], strides = [1, 1]} : vector<16x22xf32> to vector<16x16xf32>
    %446 = vector.broadcast %444 : f32 to vector<16x16xf32>
    %447 = arith.mulf %446, %445 : vector<16x16xf32>
    %448 = arith.addf %443, %447 : vector<16x16xf32>
    %449 = vector.extract_strided_slice %13 {offsets = [5, 0], sizes = [16, 22], strides = [1, 1]} : vector<22x22xf32> to vector<16x22xf32>
    %c84 = arith.constant 84 : index
    %450 = memref.load %arg1[%c84] : memref<98xf32, #tpu.memory_space<smem>>
    %451 = vector.extract_strided_slice %449 {offsets = [0, 0], sizes = [16, 16], strides = [1, 1]} : vector<16x22xf32> to vector<16x16xf32>
    %452 = vector.broadcast %450 : f32 to vector<16x16xf32>
    %453 = arith.mulf %452, %451 : vector<16x16xf32>
    %454 = arith.addf %448, %453 : vector<16x16xf32>
    %c85 = arith.constant 85 : index
    %455 = memref.load %arg1[%c85] : memref<98xf32, #tpu.memory_space<smem>>
    %456 = vector.extract_strided_slice %449 {offsets = [0, 1], sizes = [16, 16], strides = [1, 1]} : vector<16x22xf32> to vector<16x16xf32>
    %457 = vector.broadcast %455 : f32 to vector<16x16xf32>
    %458 = arith.mulf %457, %456 : vector<16x16xf32>
    %459 = arith.addf %454, %458 : vector<16x16xf32>
    %c86 = arith.constant 86 : index
    %460 = memref.load %arg1[%c86] : memref<98xf32, #tpu.memory_space<smem>>
    %461 = vector.extract_strided_slice %449 {offsets = [0, 2], sizes = [16, 16], strides = [1, 1]} : vector<16x22xf32> to vector<16x16xf32>
    %462 = vector.broadcast %460 : f32 to vector<16x16xf32>
    %463 = arith.mulf %462, %461 : vector<16x16xf32>
    %464 = arith.addf %459, %463 : vector<16x16xf32>
    %c87 = arith.constant 87 : index
    %465 = memref.load %arg1[%c87] : memref<98xf32, #tpu.memory_space<smem>>
    %466 = vector.extract_strided_slice %449 {offsets = [0, 3], sizes = [16, 16], strides = [1, 1]} : vector<16x22xf32> to vector<16x16xf32>
    %467 = vector.broadcast %465 : f32 to vector<16x16xf32>
    %468 = arith.mulf %467, %466 : vector<16x16xf32>
    %469 = arith.addf %464, %468 : vector<16x16xf32>
    %c88 = arith.constant 88 : index
    %470 = memref.load %arg1[%c88] : memref<98xf32, #tpu.memory_space<smem>>
    %471 = vector.extract_strided_slice %449 {offsets = [0, 4], sizes = [16, 16], strides = [1, 1]} : vector<16x22xf32> to vector<16x16xf32>
    %472 = vector.broadcast %470 : f32 to vector<16x16xf32>
    %473 = arith.mulf %472, %471 : vector<16x16xf32>
    %474 = arith.addf %469, %473 : vector<16x16xf32>
    %c89 = arith.constant 89 : index
    %475 = memref.load %arg1[%c89] : memref<98xf32, #tpu.memory_space<smem>>
    %476 = vector.extract_strided_slice %449 {offsets = [0, 5], sizes = [16, 16], strides = [1, 1]} : vector<16x22xf32> to vector<16x16xf32>
    %477 = vector.broadcast %475 : f32 to vector<16x16xf32>
    %478 = arith.mulf %477, %476 : vector<16x16xf32>
    %479 = arith.addf %474, %478 : vector<16x16xf32>
    %c90 = arith.constant 90 : index
    %480 = memref.load %arg1[%c90] : memref<98xf32, #tpu.memory_space<smem>>
    %481 = vector.extract_strided_slice %449 {offsets = [0, 6], sizes = [16, 16], strides = [1, 1]} : vector<16x22xf32> to vector<16x16xf32>
    %482 = vector.broadcast %480 : f32 to vector<16x16xf32>
    %483 = arith.mulf %482, %481 : vector<16x16xf32>
    %484 = arith.addf %479, %483 : vector<16x16xf32>
    %485 = vector.extract_strided_slice %13 {offsets = [6, 0], sizes = [16, 22], strides = [1, 1]} : vector<22x22xf32> to vector<16x22xf32>
    %c91 = arith.constant 91 : index
    %486 = memref.load %arg1[%c91] : memref<98xf32, #tpu.memory_space<smem>>
    %487 = vector.extract_strided_slice %485 {offsets = [0, 0], sizes = [16, 16], strides = [1, 1]} : vector<16x22xf32> to vector<16x16xf32>
    %488 = vector.broadcast %486 : f32 to vector<16x16xf32>
    %489 = arith.mulf %488, %487 : vector<16x16xf32>
    %490 = arith.addf %484, %489 : vector<16x16xf32>
    %c92 = arith.constant 92 : index
    %491 = memref.load %arg1[%c92] : memref<98xf32, #tpu.memory_space<smem>>
    %492 = vector.extract_strided_slice %485 {offsets = [0, 1], sizes = [16, 16], strides = [1, 1]} : vector<16x22xf32> to vector<16x16xf32>
    %493 = vector.broadcast %491 : f32 to vector<16x16xf32>
    %494 = arith.mulf %493, %492 : vector<16x16xf32>
    %495 = arith.addf %490, %494 : vector<16x16xf32>
    %c93 = arith.constant 93 : index
    %496 = memref.load %arg1[%c93] : memref<98xf32, #tpu.memory_space<smem>>
    %497 = vector.extract_strided_slice %485 {offsets = [0, 2], sizes = [16, 16], strides = [1, 1]} : vector<16x22xf32> to vector<16x16xf32>
    %498 = vector.broadcast %496 : f32 to vector<16x16xf32>
    %499 = arith.mulf %498, %497 : vector<16x16xf32>
    %500 = arith.addf %495, %499 : vector<16x16xf32>
    %c94 = arith.constant 94 : index
    %501 = memref.load %arg1[%c94] : memref<98xf32, #tpu.memory_space<smem>>
    %502 = vector.extract_strided_slice %485 {offsets = [0, 3], sizes = [16, 16], strides = [1, 1]} : vector<16x22xf32> to vector<16x16xf32>
    %503 = vector.broadcast %501 : f32 to vector<16x16xf32>
    %504 = arith.mulf %503, %502 : vector<16x16xf32>
    %505 = arith.addf %500, %504 : vector<16x16xf32>
    %c95 = arith.constant 95 : index
    %506 = memref.load %arg1[%c95] : memref<98xf32, #tpu.memory_space<smem>>
    %507 = vector.extract_strided_slice %485 {offsets = [0, 4], sizes = [16, 16], strides = [1, 1]} : vector<16x22xf32> to vector<16x16xf32>
    %508 = vector.broadcast %506 : f32 to vector<16x16xf32>
    %509 = arith.mulf %508, %507 : vector<16x16xf32>
    %510 = arith.addf %505, %509 : vector<16x16xf32>
    %c96 = arith.constant 96 : index
    %511 = memref.load %arg1[%c96] : memref<98xf32, #tpu.memory_space<smem>>
    %512 = vector.extract_strided_slice %485 {offsets = [0, 5], sizes = [16, 16], strides = [1, 1]} : vector<16x22xf32> to vector<16x16xf32>
    %513 = vector.broadcast %511 : f32 to vector<16x16xf32>
    %514 = arith.mulf %513, %512 : vector<16x16xf32>
    %515 = arith.addf %510, %514 : vector<16x16xf32>
    %c97 = arith.constant 97 : index
    %516 = memref.load %arg1[%c97] : memref<98xf32, #tpu.memory_space<smem>>
    %517 = vector.extract_strided_slice %485 {offsets = [0, 6], sizes = [16, 16], strides = [1, 1]} : vector<16x22xf32> to vector<16x16xf32>
    %518 = vector.broadcast %516 : f32 to vector<16x16xf32>
    %519 = arith.mulf %518, %517 : vector<16x16xf32>
    %520 = arith.addf %515, %519 : vector<16x16xf32>
    %cst_17 = arith.constant 0.000000e+00 : f32
    %521 = vector.broadcast %cst_17 : f32 to vector<16x16xf32>
    %522 = arith.subf %521, %520 : vector<16x16xf32>
    %523 = math.exp %522 : vector<16x16xf32>
    %cst_18 = arith.constant 1.000000e+00 : f32
    %524 = vector.broadcast %cst_18 : f32 to vector<16x16xf32>
    %525 = arith.addf %524, %523 : vector<16x16xf32>
    %cst_19 = arith.constant 1.000000e+00 : f32
    %526 = vector.broadcast %cst_19 : f32 to vector<16x16xf32>
    %527 = arith.divf %526, %525 : vector<16x16xf32>
    %c0_20 = arith.constant 0 : index
    %c0_21 = arith.constant 0 : index
    %c0_22 = arith.constant 0 : index
    %c0_23 = arith.constant 0 : index
    %528 = vector.load %arg3[%c0_20, %c0_21, %c0_22, %c0_23] : memref<1x1x16x16xf32, #tpu.memory_space<vmem>>, vector<1x1x16x16xf32>
    %529 = vector.shape_cast %528 : vector<1x1x16x16xf32> to vector<16x16xf32>
    %530 = vector.shape_cast %527 : vector<16x16xf32> to vector<1x1x16x16xf32>
    tpu.vector_store %arg3[%c0_20, %c0_21, %c0_22, %c0_23], %530 {strides = array<i32>} : memref<1x1x16x16xf32, #tpu.memory_space<vmem>>, vector<1x1x16x16xf32>,
    return
  }
  func.func @transform_0(%arg0: i32) -> i32 {
    %c0_i32 = arith.constant 0 : i32
    %c0_i32_0 = arith.constant 0 : i32
    return %c0_i32 : i32
  }
  func.func @transform_1(%arg0: i32) -> (i32, i32, i32, i32) {
    %c0_i32 = arith.constant 0 : i32
    %c0_i32_0 = arith.constant 0 : i32
    %c0_i32_1 = arith.constant 0 : i32
    %c0_i32_2 = arith.constant 0 : i32
    return %arg0, %c0_i32, %c0_i32_0, %c0_i32_1 : i32, i32, i32, i32
  }
  func.func @transform_2(%arg0: i32) -> (i32, i32, i32, i32) {
    %c0_i32 = arith.constant 0 : i32
    %c0_i32_0 = arith.constant 0 : i32
    %c0_i32_1 = arith.constant 0 : i32
    %c0_i32_2 = arith.constant 0 : i32
    return %arg0, %c0_i32, %c0_i32_0, %c0_i32_1 : i32, i32, i32, i32
  }
}

</mosaic_0001>

<llo_original>
// kernel: tpu_custom_call.1
$region0: #{tpu_custom_call.1}
  #allocation0 [shape = 'u32[]', space=smem, size = 0x4, offset = 0x4, fixed_abs, tag = 'smem constant byte address 0x4 - core index']
  #allocation1 [shape = 'u32[144,128]{1,0:T(1,128)}', space=vmem, size = 0x12000, scoped, tag = 'internal scratch']
  %s0 = inlined_call_operand.vmem [shape: f32[98], index: 0, kind: input, shape index: {}]
  %s1 = inlined_call_operand.vmem [shape: f32[2,4,22,22], index: 1, kind: input, shape index: {}]
  %s2 = inlined_call_operand.hbm [shape: f32[2,1,16,16], index: 2, kind: output, shape index: {}]
  %s3 = sld [smem:[#allocation0]]
  $region45: #{tpu_custom_call.1} parent=0
    _
  %s5 = ssub.s32 1, %s3
  %s6 = scalar_select 0, %s5, %s3
  $region1: #{tpu_custom_call.1} parent=0
    #allocation2 [shape = 'u8[512]{0}', space=smem, size = 0x200, scoped, tag = 'input window, operand 0, single buffered']
    #allocation3 [shape = 's32[2]{0}', space=sflag, size = 0x8, scoped, tag = 'scoped memory for tpu_custom_call.1']
    #allocation4 [shape = 's32[2]{0}', space=sflag, size = 0x8, scoped, tag = 'scoped memory for tpu_custom_call.1']
    #allocation5 [shape = 'u8[16384]{0}', space=vmem, size = 0x4000, scoped, tag = 'output window, operand 0']
    %7 = vsyncpa [#allocation4], 0
    %8 = vsyncpa [#allocation3], 0
    %s9 = scalar_lea.sflag [#allocation3], 1
    %10 = vsyncpa %s9, 0
    loop: start=0, step=1, limit=4
    $region2: #{tpu_custom_call.1} parent=1 // loop_pre_header
      _
    $region3: #{tpu_custom_call.1} parent=1 // loop_header
      %s12 = sphi 0, %s16
      %p13 = scmp.ge.s32.totalorder %s12, 4
      %s20 = sphi 0, %s20
      %s22 = sphi 0, %s20
      %s23 = sphi 0, %s22
      %s37 = sphi 0, %s23
      %s43 = sphi 0, %s45
      %s46 = sphi 0, %s43
      %s47 = sphi 0, %s46
      %s63 = sphi 0, %s47
      %s69 = sphi 0, %s71
      %s72 = sphi 0, %s69
      %s73 = sphi 0, %s72
      %s89 = sphi 0, %s73
    $region4: #{tpu_custom_call.1} parent=1 // loop_header_branch
      %15 = sbr.rel (%p13) target = $region8
    $region5: #{tpu_custom_call.1} parent=1 // loop_body
      %s17 = ssub.s32 %s12, 1
      %s18 = ssub.s32 %s12, 2
      %s19 = sadd.s32 %s12, 1
      %s21 = sadd.s32 %s20, 1
      %p24 = scmp.eq.s32.totalorder %s12, 1
      %p25 = scmp.ne.s32.totalorder %s20, %s22
      %p26 = scmp.eq.s32.totalorder %s12, 0
      %p27 = por %p25, %p26
      %p28 = scmp.ne.s32.totalorder %s20, %s22
      %p29 = scmp.eq.s32.totalorder %s17, 1
      %p30 = por %p28, %p29
      %p31 = scmp.ne.s32.totalorder %s22, %s23
      %p32 = scmp.eq.s32.totalorder %s17, 0
      %p33 = por %p31, %p32
      %p34 = scmp.ne.s32.totalorder %s22, %s23
      %p35 = scmp.eq.s32.totalorder %s18, 1
      %p36 = por %p34, %p35
      %p38 = scmp.ne.s32.totalorder %s23, %s37
      %p39 = scmp.eq.s32.totalorder %s18, 0
      %p40 = por %p38, %p39
      %s41 = ssub.s32 %s12, %s19
      %p42 = scmp.eq.s32.totalorder %s41, 0
      %s44 = sadd.s32 %s43, 1
      %s45 = scalar_select %p42, %s43, %s44
      %p48 = pneg %p42
      %p49 = scmp.eq.s32.totalorder %s12, 1
      %p50 = por %p48, %p49
      %p51 = scmp.ne.s32.totalorder %s43, %s46
      %p52 = scmp.eq.s32.totalorder %s12, 0
      %p53 = por %p51, %p52
      %p54 = scmp.ne.s32.totalorder %s43, %s46
      %p55 = scmp.eq.s32.totalorder %s17, 1
      %p56 = por %p54, %p55
      %p57 = scmp.ne.s32.totalorder %s46, %s47
      %p58 = scmp.eq.s32.totalorder %s17, 0
      %p59 = por %p57, %p58
      %p60 = scmp.ne.s32.totalorder %s46, %s47
      %p61 = scmp.eq.s32.totalorder %s18, 1
      %p62 = por %p60, %p61
      %p64 = scmp.ne.s32.totalorder %s47, %s63
      %p65 = scmp.eq.s32.totalorder %s18, 0
      %p66 = por %p64, %p65
      %s67 = ssub.s32 %s12, %s19
      %p68 = scmp.eq.s32.totalorder %s67, 0
      %s70 = sadd.s32 %s69, 1
      %s71 = scalar_select %p68, %s69, %s70
      %p74 = pneg %p68
      %p75 = scmp.eq.s32.totalorder %s12, 1
      %p76 = por %p74, %p75
      %p77 = scmp.ne.s32.totalorder %s69, %s72
      %p78 = scmp.eq.s32.totalorder %s12, 0
      %p79 = por %p77, %p78
      %p80 = scmp.ne.s32.totalorder %s69, %s72
      %p81 = scmp.eq.s32.totalorder %s17, 1
      %p82 = por %p80, %p81
      %p83 = scmp.ne.s32.totalorder %s72, %s73
      %p84 = scmp.eq.s32.totalorder %s17, 0
      %p85 = por %p83, %p84
      %p86 = scmp.ne.s32.totalorder %s72, %s73
      %p87 = scmp.eq.s32.totalorder %s18, 1
      %p88 = por %p86, %p87
      %p90 = scmp.ne.s32.totalorder %s73, %s89
      %p91 = scmp.eq.s32.totalorder %s18, 0
      %p92 = por %p90, %p91
      %p93 = scmp.le.s32.totalorder 1, %s12
      %p94 = scmp.lt.s32.totalorder %s12, 3
      %p95 = pnand %p93, %p94
      %p96 = pneg %p95
      // Predicated region
      $region9: #{tpu_custom_call.1} parent=5 // pred_check
        _
      $region10: #{tpu_custom_call.1} parent=5 // pred_check_branch
        %98 = sbr.rel (%p95) target = $region12
      $region11: #{tpu_custom_call.1} parent=5 // pred_region
        %s99 = ssub.s32 %s12, 1
        // Predicated region
        $region13: #{tpu_custom_call.1} parent=11 // pred_check
          %p100 = pneg %p33
        $region14: #{tpu_custom_call.1} parent=11 // pred_check_branch
          %102 = sbr.rel (%p100) target = $region16
        $region15: #{tpu_custom_call.1} parent=11 // pred_region
          %s104 = ssub.s32 16, 16
          %105 = vsyncadd [#allocation4], %s104
          %s107 = sshll.u32 %s0, 4
          %s108 = int_to_ptr.vmem [resolvable:$true] %s107
          %110 = dma.vmem_to_smem %s108, 16, [#allocation2], [#allocation4]
        $region16: #{tpu_custom_call.1} parent=11 // pred_fallthru
          _
      $region12: #{tpu_custom_call.1} parent=5 // pred_fallthru
        _
      %p111 = scmp.lt.s32.totalorder %s12, 2
      // Predicated region
      $region17: #{tpu_custom_call.1} parent=5 // pred_check
        %p112 = pneg %p111
      $region18: #{tpu_custom_call.1} parent=5 // pred_check_branch
        %114 = sbr.rel (%p112) target = $region20
      $region19: #{tpu_custom_call.1} parent=5 // pred_region
        // Predicated region
        $region21: #{tpu_custom_call.1} parent=19 // pred_check
          %p115 = pneg %p53
        $region22: #{tpu_custom_call.1} parent=19 // pred_check_branch
          %117 = sbr.rel (%p115) target = $region24
        $region23: #{tpu_custom_call.1} parent=19 // pred_region
          %p118 = scmp.lt.s32.totalorder %s12, 1
          %s119 = scalar_select %p118, %s12, 1
          %s120 = smul.addr %s119, 12
          %s121 = smul.addr %s120, 8
          %s122 = scalar_lea.vmem %s1, %s121
        $region24: #{tpu_custom_call.1} parent=19 // pred_fallthru
          _
      $region20: #{tpu_custom_call.1} parent=5 // pred_fallthru
        _
      %p123 = scmp.le.s32.totalorder 1, %s12
      %p124 = scmp.lt.s32.totalorder %s12, 3
      %p125 = pnand %p123, %p124
      %p126 = pneg %p125
      // Predicated region
      $region25: #{tpu_custom_call.1} parent=5 // pred_check
        _
      $region26: #{tpu_custom_call.1} parent=5 // pred_check_branch
        %128 = sbr.rel (%p125) target = $region28
      $region27: #{tpu_custom_call.1} parent=5 // pred_region
        %s129 = ssub.s32 %s12, 1
        // Predicated region
        $region29: #{tpu_custom_call.1} parent=27 // pred_check
          %p130 = pneg %p33
        $region30: #{tpu_custom_call.1} parent=27 // pred_check_branch
          %132 = sbr.rel (%p130) target = $region32
        $region31: #{tpu_custom_call.1} parent=27 // pred_region
          %133 = dma.done [#allocation4], 16
        $region32: #{tpu_custom_call.1} parent=27 // pred_fallthru
          _
        %134 = sfence
        %p135 = pneg %p33
        %p136 = pneg %p30
        %p137 = scmp.lt.s32.totalorder %s17, 1
        %s138 = scalar_select %p137, %s17, 1
        %s139 = smul.addr %s138, 12
        %s140 = smul.addr %s139, 8
        %s141 = scalar_lea.vmem %s1, %s140
        %p142 = pneg %p59
        %p143 = pneg %p56
        %p144 = pneg %p85
        %p145 = pneg %p82
        %s146 = sand.u32 %s72, 1
        %s147 = scalar_lea.sflag [#allocation3], %s146
        %s148 = sand.u32 %s72, 1
        %s149 = smul.addr %s148, 16
        %s150 = scalar_lea.vmem [#allocation5], %s149
        %p151 = scmp.lt.s32.totalorder %s17, 1
        %s152 = scalar_select %p151, %s17, 1
        %s153 = smul.addr %s152, 12
        %s154 = smul.addr %s153, 8
        %s155 = scalar_lea.vmem %s1, %s154
        %v156 = vld [vmem:[%s155] sm:$0xff]
        %v157 = vld [vmem:[%s155 + $0x8] sm:$0xff]
        %v158 = vld [vmem:[%s155 + $0x10] sm:$0x3f]
        %s159 = scalar_lea.vmem %s155, 24
        %v160 = vld [vmem:[%s159] sm:$0xff]
        %v161 = vld [vmem:[%s159 + $0x8] sm:$0xff]
        %v162 = vld [vmem:[%s159 + $0x10] sm:$0x3f]
        %v163 = vadd.f32 %v156, %v160
        %v164 = vadd.f32 %v157, %v161
        %v165 = vadd.f32 %v158, %v162
        %v166 = vmax.f32 %v156, %v160
        %v167 = vmax.f32 %v157, %v161
        %v168 = vmax.f32 %v158, %v162
        %s169 = scalar_lea.vmem %s155, 48
        %v170 = vld [vmem:[%s169] sm:$0xff]
        %v171 = vld [vmem:[%s169 + $0x8] sm:$0xff]
        %v172 = vld [vmem:[%s169 + $0x10] sm:$0x3f]
        %v173 = vadd.f32 %v163, %v170
        %v174 = vadd.f32 %v164, %v171
        %v175 = vadd.f32 %v165, %v172
        %v176 = vmax.f32 %v166, %v170
        %v177 = vmax.f32 %v167, %v171
        %v178 = vmax.f32 %v168, %v172
        %s179 = scalar_lea.vmem %s155, 72
        %v180 = vld [vmem:[%s179] sm:$0xff]
        %v181 = vld [vmem:[%s179 + $0x8] sm:$0xff]
        %v182 = vld [vmem:[%s179 + $0x10] sm:$0x3f]
        %v183 = vadd.f32 %v173, %v180
        %v184 = vadd.f32 %v174, %v181
        %v185 = vadd.f32 %v175, %v182
        %v186 = vmax.f32 %v176, %v180
        %v187 = vmax.f32 %v177, %v181
        %v188 = vmax.f32 %v178, %v182
        %v189 = vmul.f32 %v183, 0.25
        %v190 = vmul.f32 %v184, 0.25
        %v191 = vmul.f32 %v185, 0.25
        %s192 = sld [smem:[#allocation2]]
        %v193 = vstv %s192
        %v194 = vmul.f32 %v193, %v189
        %v195 = vmul.f32 %v193, %v190
        %v196 = vadd.f32 %v194, 0.0
        %v197 = vadd.f32 %v195, 0.0
        %s198 = sld [smem:[#allocation2 + $0x1]]
        %v199 = vstv %s198
        %v200 = vmul.f32 %v199, %v189
        %v201 = vmul.f32 %v199, %v190
        %204 = vrot.lane.b32.xlu0 %v200, 127
        %v205 = vpop.permute.xlu0 %204
        %206 = vrot.lane.b32.xlu0 %v201, 127
        %v207 = vpop.permute.xlu0 %206
        %v210 = vadd.f32 %v196, %v205
        %v211 = vadd.f32 %v197, %v207
        %s212 = sld [smem:[#allocation2 + $0x2]]
        %v213 = vstv %s212
        %v214 = vmul.f32 %v213, %v189
        %v215 = vmul.f32 %v213, %v190
        %218 = vrot.lane.b32.xlu0 %v214, 126
        %v219 = vpop.permute.xlu0 %218
        %220 = vrot.lane.b32.xlu0 %v215, 126
        %v221 = vpop.permute.xlu0 %220
        %v224 = vadd.f32 %v210, %v219
        %v225 = vadd.f32 %v211, %v221
        %s226 = sld [smem:[#allocation2 + $0x3]]
        %v227 = vstv %s226
        %v228 = vmul.f32 %v227, %v189
        %v229 = vmul.f32 %v227, %v190
        %232 = vrot.lane.b32.xlu0 %v228, 125
        %v233 = vpop.permute.xlu0 %232
        %234 = vrot.lane.b32.xlu0 %v229, 125
        %v235 = vpop.permute.xlu0 %234
        %v238 = vadd.f32 %v224, %v233
        %v239 = vadd.f32 %v225, %v235
        %s240 = sld [smem:[#allocation2 + $0x4]]
        %v241 = vstv %s240
        %v242 = vmul.f32 %v241, %v189
        %v243 = vmul.f32 %v241, %v190
        %246 = vrot.lane.b32.xlu0 %v242, 124
        %v247 = vpop.permute.xlu0 %246
        %248 = vrot.lane.b32.xlu0 %v243, 124
        %v249 = vpop.permute.xlu0 %248
        %v252 = vadd.f32 %v238, %v247
        %v253 = vadd.f32 %v239, %v249
        %s254 = sld [smem:[#allocation2 + $0x5]]
        %v255 = vstv %s254
        %v256 = vmul.f32 %v255, %v189
        %v257 = vmul.f32 %v255, %v190
        %260 = vrot.lane.b32.xlu0 %v256, 123
        %v261 = vpop.permute.xlu0 %260
        %262 = vrot.lane.b32.xlu0 %v257, 123
        %v263 = vpop.permute.xlu0 %262
        %v266 = vadd.f32 %v252, %v261
        %v267 = vadd.f32 %v253, %v263
        %s268 = sld [smem:[#allocation2 + $0x6]]
        %v269 = vstv %s268
        %v270 = vmul.f32 %v269, %v189
        %v271 = vmul.f32 %v269, %v190
        %274 = vrot.lane.b32.xlu0 %v270, 122
        %v275 = vpop.permute.xlu0 %274
        %276 = vrot.lane.b32.xlu0 %v271, 122
        %v277 = vpop.permute.xlu0 %276
        %v280 = vadd.f32 %v266, %v275
        %v281 = vadd.f32 %v267, %v277
        %s282 = sld [smem:[#allocation2 + $0x7]]
        %v283 = vstv %s282
        %v284 = vmul.f32 %v283, %v189
        %v285 = vmul.f32 %v283, %v190
        %v286 = vmul.f32 %v283, %v191
        %vm290 = vcmask 1046528
        %v291 = vrot.slane %v284, 1
        %v292 = vrot.slane %v285, 1
        %v293 = vsel %vm290, %v291, %v292
        %v294 = vrot.slane %v286, 1
        %v295 = vsel %vm290, %v292, %v294
        %v298 = vadd.f32 %v280, %v293
        %v299 = vadd.f32 %v281, %v295
        %s300 = sld [smem:[#allocation2 + $0x8]]
        %v301 = vstv %s300
        %v302 = vmul.f32 %v301, %v189
        %v303 = vmul.f32 %v301, %v190
        %v304 = vmul.f32 %v301, %v191
        %v308 = vrot.slane %v302, 1
        %v309 = vrot.slane %v303, 1
        %v310 = vsel %vm290, %v308, %v309
        %v311 = vrot.slane %v304, 1
        %v312 = vsel %vm290, %v309, %v311
        %313 = vrot.lane.b32.xlu0 %v310, 127
        %v314 = vpop.permute.xlu0 %313
        %315 = vrot.lane.b32.xlu0 %v312, 127
        %v316 = vpop.permute.xlu0 %315
        %v319 = vadd.f32 %v298, %v314
        %v320 = vadd.f32 %v299, %v316
        %s321 = sld [smem:[#allocation2 + $0x9]]
        %v322 = vstv %s321
        %v323 = vmul.f32 %v322, %v189
        %v324 = vmul.f32 %v322, %v190
        %v325 = vmul.f32 %v322, %v191
        %v329 = vrot.slane %v323, 1
        %v330 = vrot.slane %v324, 1
        %v331 = vsel %vm290, %v329, %v330
        %v332 = vrot.slane %v325, 1
        %v333 = vsel %vm290, %v330, %v332
        %334 = vrot.lane.b32.xlu0 %v331, 126
        %v335 = vpop.permute.xlu0 %334
        %336 = vrot.lane.b32.xlu0 %v333, 126
        %v337 = vpop.permute.xlu0 %336
        %v340 = vadd.f32 %v319, %v335
        %v341 = vadd.f32 %v320, %v337
        %s342 = sld [smem:[#allocation2 + $0xa]]
        %v343 = vstv %s342
        %v344 = vmul.f32 %v343, %v189
        %v345 = vmul.f32 %v343, %v190
        %v346 = vmul.f32 %v343, %v191
        %v350 = vrot.slane %v344, 1
        %v351 = vrot.slane %v345, 1
        %v352 = vsel %vm290, %v350, %v351
        %v353 = vrot.slane %v346, 1
        %v354 = vsel %vm290, %v351, %v353
        %355 = vrot.lane.b32.xlu0 %v352, 125
        %v356 = vpop.permute.xlu0 %355
        %357 = vrot.lane.b32.xlu0 %v354, 125
        %v358 = vpop.permute.xlu0 %357
        %v361 = vadd.f32 %v340, %v356
        %v362 = vadd.f32 %v341, %v358
        %s363 = sld [smem:[#allocation2 + $0xb]]
        %v364 = vstv %s363
        %v365 = vmul.f32 %v364, %v189
        %v366 = vmul.f32 %v364, %v190
        %v367 = vmul.f32 %v364, %v191
        %v371 = vrot.slane %v365, 1
        %v372 = vrot.slane %v366, 1
        %v373 = vsel %vm290, %v371, %v372
        %v374 = vrot.slane %v367, 1
        %v375 = vsel %vm290, %v372, %v374
        %376 = vrot.lane.b32.xlu0 %v373, 124
        %v377 = vpop.permute.xlu0 %376
        %378 = vrot.lane.b32.xlu0 %v375, 124
        %v379 = vpop.permute.xlu0 %378
        %v382 = vadd.f32 %v361, %v377
        %v383 = vadd.f32 %v362, %v379
        %s384 = sld [smem:[#allocation2 + $0xc]]
        %v385 = vstv %s384
        %v386 = vmul.f32 %v385, %v189
        %v387 = vmul.f32 %v385, %v190
        %v388 = vmul.f32 %v385, %v191
        %v392 = vrot.slane %v386, 1
        %v393 = vrot.slane %v387, 1
        %v394 = vsel %vm290, %v392, %v393
        %v395 = vrot.slane %v388, 1
        %v396 = vsel %vm290, %v393, %v395
        %397 = vrot.lane.b32.xlu0 %v394, 123
        %v398 = vpop.permute.xlu0 %397
        %399 = vrot.lane.b32.xlu0 %v396, 123
        %v400 = vpop.permute.xlu0 %399
        %v403 = vadd.f32 %v382, %v398
        %v404 = vadd.f32 %v383, %v400
        %s405 = sld [smem:[#allocation2 + $0xd]]
        %v406 = vstv %s405
        %v407 = vmul.f32 %v406, %v189
        %v408 = vmul.f32 %v406, %v190
        %v409 = vmul.f32 %v406, %v191
        %v413 = vrot.slane %v407, 1
        %v414 = vrot.slane %v408, 1
        %v415 = vsel %vm290, %v413, %v414
        %v416 = vrot.slane %v409, 1
        %v417 = vsel %vm290, %v414, %v416
        %418 = vrot.lane.b32.xlu0 %v415, 122
        %v419 = vpop.permute.xlu0 %418
        %420 = vrot.lane.b32.xlu0 %v417, 122
        %v421 = vpop.permute.xlu0 %420
        %v424 = vadd.f32 %v403, %v419
        %v425 = vadd.f32 %v404, %v421
        %s426 = sld [smem:[#allocation2 + $0xe]]
        %v427 = vstv %s426
        %v428 = vmul.f32 %v427, %v189
        %v429 = vmul.f32 %v427, %v190
        %v430 = vmul.f32 %v427, %v191
        %vm434 = vcmask 1045504
        %v435 = vrot.slane %v428, 2
        %v436 = vrot.slane %v429, 2
        %v437 = vsel %vm434, %v435, %v436
        %v438 = vrot.slane %v430, 2
        %v439 = vsel %vm434, %v436, %v438
        %v442 = vadd.f32 %v424, %v437
        %v443 = vadd.f32 %v425, %v439
        %s444 = sld [smem:[#allocation2 + $0xf]]
        %v445 = vstv %s444
        %v446 = vmul.f32 %v445, %v189
        %v447 = vmul.f32 %v445, %v190
        %v448 = vmul.f32 %v445, %v191
        %v452 = vrot.slane %v446, 2
        %v453 = vrot.slane %v447, 2
        %v454 = vsel %vm434, %v452, %v453
        %v455 = vrot.slane %v448, 2
        %v456 = vsel %vm434, %v453, %v455
        %457 = vrot.lane.b32.xlu0 %v454, 127
        %v458 = vpop.permute.xlu0 %457
        %459 = vrot.lane.b32.xlu0 %v456, 127
        %v460 = vpop.permute.xlu0 %459
        %v463 = vadd.f32 %v442, %v458
        %v464 = vadd.f32 %v443, %v460
        %s465 = sld [smem:[#allocation2 + $0x10]]
        %v466 = vstv %s465
        %v467 = vmul.f32 %v466, %v189
        %v468 = vmul.f32 %v466, %v190
        %v469 = vmul.f32 %v466, %v191
        %v473 = vrot.slane %v467, 2
        %v474 = vrot.slane %v468, 2
        %v475 = vsel %vm434, %v473, %v474
        %v476 = vrot.slane %v469, 2
        %v477 = vsel %vm434, %v474, %v476
        %478 = vrot.lane.b32.xlu0 %v475, 126
        %v479 = vpop.permute.xlu0 %478
        %480 = vrot.lane.b32.xlu0 %v477, 126
        %v481 = vpop.permute.xlu0 %480
        %v484 = vadd.f32 %v463, %v479
        %v485 = vadd.f32 %v464, %v481
        %s486 = sld [smem:[#allocation2 + $0x11]]
        %v487 = vstv %s486
        %v488 = vmul.f32 %v487, %v189
        %v489 = vmul.f32 %v487, %v190
        %v490 = vmul.f32 %v487, %v191
        %v494 = vrot.slane %v488, 2
        %v495 = vrot.slane %v489, 2
        %v496 = vsel %vm434, %v494, %v495
        %v497 = vrot.slane %v490, 2
        %v498 = vsel %vm434, %v495, %v497
        %499 = vrot.lane.b32.xlu0 %v496, 125
        %v500 = vpop.permute.xlu0 %499
        %501 = vrot.lane.b32.xlu0 %v498, 125
        %v502 = vpop.permute.xlu0 %501
        %v505 = vadd.f32 %v484, %v500
        %v506 = vadd.f32 %v485, %v502
        %s507 = sld [smem:[#allocation2 + $0x12]]
        %v508 = vstv %s507
        %v509 = vmul.f32 %v508, %v189
        %v510 = vmul.f32 %v508, %v190
        %v511 = vmul.f32 %v508, %v191
        %v515 = vrot.slane %v509, 2
        %v516 = vrot.slane %v510, 2
        %v517 = vsel %vm434, %v515, %v516
        %v518 = vrot.slane %v511, 2
        %v519 = vsel %vm434, %v516, %v518
        %520 = vrot.lane.b32.xlu0 %v517, 124
        %v521 = vpop.permute.xlu0 %520
        %522 = vrot.lane.b32.xlu0 %v519, 124
        %v523 = vpop.permute.xlu0 %522
        %v526 = vadd.f32 %v505, %v521
        %v527 = vadd.f32 %v506, %v523
        %s528 = sld [smem:[#allocation2 + $0x13]]
        %v529 = vstv %s528
        %v530 = vmul.f32 %v529, %v189
        %v531 = vmul.f32 %v529, %v190
        %v532 = vmul.f32 %v529, %v191
        %v536 = vrot.slane %v530, 2
        %v537 = vrot.slane %v531, 2
        %v538 = vsel %vm434, %v536, %v537
        %v539 = vrot.slane %v532, 2
        %v540 = vsel %vm434, %v537, %v539
        %541 = vrot.lane.b32.xlu0 %v538, 123
        %v542 = vpop.permute.xlu0 %541
        %543 = vrot.lane.b32.xlu0 %v540, 123
        %v544 = vpop.permute.xlu0 %543
        %v547 = vadd.f32 %v526, %v542
        %v548 = vadd.f32 %v527, %v544
        %s549 = sld [smem:[#allocation2 + $0x14]]
        %v550 = vstv %s549
        %v551 = vmul.f32 %v550, %v189
        %v552 = vmul.f32 %v550, %v190
        %v553 = vmul.f32 %v550, %v191
        %v557 = vrot.slane %v551, 2
        %v558 = vrot.slane %v552, 2
        %v559 = vsel %vm434, %v557, %v558
        %v560 = vrot.slane %v553, 2
        %v561 = vsel %vm434, %v558, %v560
        %562 = vrot.lane.b32.xlu0 %v559, 122
        %v563 = vpop.permute.xlu0 %562
        %564 = vrot.lane.b32.xlu0 %v561, 122
        %v565 = vpop.permute.xlu0 %564
        %v568 = vadd.f32 %v547, %v563
        %v569 = vadd.f32 %v548, %v565
        %s570 = sld [smem:[#allocation2 + $0x15]]
        %v571 = vstv %s570
        %v572 = vmul.f32 %v571, %v189
        %v573 = vmul.f32 %v571, %v190
        %v574 = vmul.f32 %v571, %v191
        %vm578 = vcmask 1044480
        %v579 = vrot.slane %v572, 3
        %v580 = vrot.slane %v573, 3
        %v581 = vsel %vm578, %v579, %v580
        %v582 = vrot.slane %v574, 3
        %v583 = vsel %vm578, %v580, %v582
        %v586 = vadd.f32 %v568, %v581
        %v587 = vadd.f32 %v569, %v583
        %s588 = sld [smem:[#allocation2 + $0x16]]
        %v589 = vstv %s588
        %v590 = vmul.f32 %v589, %v189
        %v591 = vmul.f32 %v589, %v190
        %v592 = vmul.f32 %v589, %v191
        %v596 = vrot.slane %v590, 3
        %v597 = vrot.slane %v591, 3
        %v598 = vsel %vm578, %v596, %v597
        %v599 = vrot.slane %v592, 3
        %v600 = vsel %vm578, %v597, %v599
        %601 = vrot.lane.b32.xlu0 %v598, 127
        %v602 = vpop.permute.xlu0 %601
        %603 = vrot.lane.b32.xlu0 %v600, 127
        %v604 = vpop.permute.xlu0 %603
        %v607 = vadd.f32 %v586, %v602
        %v608 = vadd.f32 %v587, %v604
        %s609 = sld [smem:[#allocation2 + $0x17]]
        %v610 = vstv %s609
        %v611 = vmul.f32 %v610, %v189
        %v612 = vmul.f32 %v610, %v190
        %v613 = vmul.f32 %v610, %v191
        %v617 = vrot.slane %v611, 3
        %v618 = vrot.slane %v612, 3
        %v619 = vsel %vm578, %v617, %v618
        %v620 = vrot.slane %v613, 3
        %v621 = vsel %vm578, %v618, %v620
        %622 = vrot.lane.b32.xlu0 %v619, 126
        %v623 = vpop.permute.xlu0 %622
        %624 = vrot.lane.b32.xlu0 %v621, 126
        %v625 = vpop.permute.xlu0 %624
        %v628 = vadd.f32 %v607, %v623
        %v629 = vadd.f32 %v608, %v625
        %s630 = sld [smem:[#allocation2 + $0x18]]
        %v631 = vstv %s630
        %v632 = vmul.f32 %v631, %v189
        %v633 = vmul.f32 %v631, %v190
        %v634 = vmul.f32 %v631, %v191
        %v638 = vrot.slane %v632, 3
        %v639 = vrot.slane %v633, 3
        %v640 = vsel %vm578, %v638, %v639
        %v641 = vrot.slane %v634, 3
        %v642 = vsel %vm578, %v639, %v641
        %643 = vrot.lane.b32.xlu0 %v640, 125
        %v644 = vpop.permute.xlu0 %643
        %645 = vrot.lane.b32.xlu0 %v642, 125
        %v646 = vpop.permute.xlu0 %645
        %v649 = vadd.f32 %v628, %v644
        %v650 = vadd.f32 %v629, %v646
        %s651 = sld [smem:[#allocation2 + $0x19]]
        %v652 = vstv %s651
        %v653 = vmul.f32 %v652, %v189
        %v654 = vmul.f32 %v652, %v190
        %v655 = vmul.f32 %v652, %v191
        %v659 = vrot.slane %v653, 3
        %v660 = vrot.slane %v654, 3
        %v661 = vsel %vm578, %v659, %v660
        %v662 = vrot.slane %v655, 3
        %v663 = vsel %vm578, %v660, %v662
        %664 = vrot.lane.b32.xlu0 %v661, 124
        %v665 = vpop.permute.xlu0 %664
        %666 = vrot.lane.b32.xlu0 %v663, 124
        %v667 = vpop.permute.xlu0 %666
        %v670 = vadd.f32 %v649, %v665
        %v671 = vadd.f32 %v650, %v667
        %s672 = sld [smem:[#allocation2 + $0x1a]]
        %v673 = vstv %s672
        %v674 = vmul.f32 %v673, %v189
        %v675 = vmul.f32 %v673, %v190
        %v676 = vmul.f32 %v673, %v191
        %v680 = vrot.slane %v674, 3
        %v681 = vrot.slane %v675, 3
        %v682 = vsel %vm578, %v680, %v681
        %v683 = vrot.slane %v676, 3
        %v684 = vsel %vm578, %v681, %v683
        %685 = vrot.lane.b32.xlu0 %v682, 123
        %v686 = vpop.permute.xlu0 %685
        %687 = vrot.lane.b32.xlu0 %v684, 123
        %v688 = vpop.permute.xlu0 %687
        %v691 = vadd.f32 %v670, %v686
        %v692 = vadd.f32 %v671, %v688
        %s693 = sld [smem:[#allocation2 + $0x1b]]
        %v694 = vstv %s693
        %v695 = vmul.f32 %v694, %v189
        %v696 = vmul.f32 %v694, %v190
        %v697 = vmul.f32 %v694, %v191
        %v701 = vrot.slane %v695, 3
        %v702 = vrot.slane %v696, 3
        %v703 = vsel %vm578, %v701, %v702
        %v704 = vrot.slane %v697, 3
        %v705 = vsel %vm578, %v702, %v704
        %706 = vrot.lane.b32.xlu0 %v703, 122
        %v707 = vpop.permute.xlu0 %706
        %708 = vrot.lane.b32.xlu0 %v705, 122
        %v709 = vpop.permute.xlu0 %708
        %v712 = vadd.f32 %v691, %v707
        %v713 = vadd.f32 %v692, %v709
        %s714 = sld [smem:[#allocation2 + $0x1c]]
        %v715 = vstv %s714
        %v716 = vmul.f32 %v715, %v189
        %v717 = vmul.f32 %v715, %v190
        %v718 = vmul.f32 %v715, %v191
        %vm722 = vcmask 1043456
        %v723 = vrot.slane %v716, 4
        %v724 = vrot.slane %v717, 4
        %v725 = vsel %vm722, %v723, %v724
        %v726 = vrot.slane %v718, 4
        %v727 = vsel %vm722, %v724, %v726
        %v730 = vadd.f32 %v712, %v725
        %v731 = vadd.f32 %v713, %v727
        %s732 = sld [smem:[#allocation2 + $0x1d]]
        %v733 = vstv %s732
        %v734 = vmul.f32 %v733, %v189
        %v735 = vmul.f32 %v733, %v190
        %v736 = vmul.f32 %v733, %v191
        %v740 = vrot.slane %v734, 4
        %v741 = vrot.slane %v735, 4
        %v742 = vsel %vm722, %v740, %v741
        %v743 = vrot.slane %v736, 4
        %v744 = vsel %vm722, %v741, %v743
        %745 = vrot.lane.b32.xlu0 %v742, 127
        %v746 = vpop.permute.xlu0 %745
        %747 = vrot.lane.b32.xlu0 %v744, 127
        %v748 = vpop.permute.xlu0 %747
        %v751 = vadd.f32 %v730, %v746
        %v752 = vadd.f32 %v731, %v748
        %s753 = sld [smem:[#allocation2 + $0x1e]]
        %v754 = vstv %s753
        %v755 = vmul.f32 %v754, %v189
        %v756 = vmul.f32 %v754, %v190
        %v757 = vmul.f32 %v754, %v191
        %v761 = vrot.slane %v755, 4
        %v762 = vrot.slane %v756, 4
        %v763 = vsel %vm722, %v761, %v762
        %v764 = vrot.slane %v757, 4
        %v765 = vsel %vm722, %v762, %v764
        %766 = vrot.lane.b32.xlu0 %v763, 126
        %v767 = vpop.permute.xlu0 %766
        %768 = vrot.lane.b32.xlu0 %v765, 126
        %v769 = vpop.permute.xlu0 %768
        %v772 = vadd.f32 %v751, %v767
        %v773 = vadd.f32 %v752, %v769
        %s774 = sld [smem:[#allocation2 + $0x1f]]
        %v775 = vstv %s774
        %v776 = vmul.f32 %v775, %v189
        %v777 = vmul.f32 %v775, %v190
        %v778 = vmul.f32 %v775, %v191
        %v782 = vrot.slane %v776, 4
        %v783 = vrot.slane %v777, 4
        %v784 = vsel %vm722, %v782, %v783
        %v785 = vrot.slane %v778, 4
        %v786 = vsel %vm722, %v783, %v785
        %787 = vrot.lane.b32.xlu0 %v784, 125
        %v788 = vpop.permute.xlu0 %787
        %789 = vrot.lane.b32.xlu0 %v786, 125
        %v790 = vpop.permute.xlu0 %789
        %v793 = vadd.f32 %v772, %v788
        %v794 = vadd.f32 %v773, %v790
        %s795 = sld [smem:[#allocation2 + $0x20]]
        %v796 = vstv %s795
        %v797 = vmul.f32 %v796, %v189
        %v798 = vmul.f32 %v796, %v190
        %v799 = vmul.f32 %v796, %v191
        %v803 = vrot.slane %v797, 4
        %v804 = vrot.slane %v798, 4
        %v805 = vsel %vm722, %v803, %v804
        %v806 = vrot.slane %v799, 4
        %v807 = vsel %vm722, %v804, %v806
        %808 = vrot.lane.b32.xlu0 %v805, 124
        %v809 = vpop.permute.xlu0 %808
        %810 = vrot.lane.b32.xlu0 %v807, 124
        %v811 = vpop.permute.xlu0 %810
        %v814 = vadd.f32 %v793, %v809
        %v815 = vadd.f32 %v794, %v811
        %s816 = sld [smem:[#allocation2 + $0x21]]
        %v817 = vstv %s816
        %v818 = vmul.f32 %v817, %v189
        %v819 = vmul.f32 %v817, %v190
        %v820 = vmul.f32 %v817, %v191
        %v824 = vrot.slane %v818, 4
        %v825 = vrot.slane %v819, 4
        %v826 = vsel %vm722, %v824, %v825
        %v827 = vrot.slane %v820, 4
        %v828 = vsel %vm722, %v825, %v827
        %829 = vrot.lane.b32.xlu0 %v826, 123
        %v830 = vpop.permute.xlu0 %829
        %831 = vrot.lane.b32.xlu0 %v828, 123
        %v832 = vpop.permute.xlu0 %831
        %v835 = vadd.f32 %v814, %v830
        %v836 = vadd.f32 %v815, %v832
        %s837 = sld [smem:[#allocation2 + $0x22]]
        %v838 = vstv %s837
        %v839 = vmul.f32 %v838, %v189
        %v840 = vmul.f32 %v838, %v190
        %v841 = vmul.f32 %v838, %v191
        %v845 = vrot.slane %v839, 4
        %v846 = vrot.slane %v840, 4
        %v847 = vsel %vm722, %v845, %v846
        %v848 = vrot.slane %v841, 4
        %v849 = vsel %vm722, %v846, %v848
        %850 = vrot.lane.b32.xlu0 %v847, 122
        %v851 = vpop.permute.xlu0 %850
        %852 = vrot.lane.b32.xlu0 %v849, 122
        %v853 = vpop.permute.xlu0 %852
        %v856 = vadd.f32 %v835, %v851
        %v857 = vadd.f32 %v836, %v853
        %s858 = sld [smem:[#allocation2 + $0x23]]
        %v859 = vstv %s858
        %v860 = vmul.f32 %v859, %v189
        %v861 = vmul.f32 %v859, %v190
        %v862 = vmul.f32 %v859, %v191
        %vm866 = vcmask 1042432
        %v867 = vrot.slane %v860, 5
        %v868 = vrot.slane %v861, 5
        %v869 = vsel %vm866, %v867, %v868
        %v870 = vrot.slane %v862, 5
        %v871 = vsel %vm866, %v868, %v870
        %v874 = vadd.f32 %v856, %v869
        %v875 = vadd.f32 %v857, %v871
        %s876 = sld [smem:[#allocation2 + $0x24]]
        %v877 = vstv %s876
        %v878 = vmul.f32 %v877, %v189
        %v879 = vmul.f32 %v877, %v190
        %v880 = vmul.f32 %v877, %v191
        %v884 = vrot.slane %v878, 5
        %v885 = vrot.slane %v879, 5
        %v886 = vsel %vm866, %v884, %v885
        %v887 = vrot.slane %v880, 5
        %v888 = vsel %vm866, %v885, %v887
        %889 = vrot.lane.b32.xlu0 %v886, 127
        %v890 = vpop.permute.xlu0 %889
        %891 = vrot.lane.b32.xlu0 %v888, 127
        %v892 = vpop.permute.xlu0 %891
        %v895 = vadd.f32 %v874, %v890
        %v896 = vadd.f32 %v875, %v892
        %s897 = sld [smem:[#allocation2 + $0x25]]
        %v898 = vstv %s897
        %v899 = vmul.f32 %v898, %v189
        %v900 = vmul.f32 %v898, %v190
        %v901 = vmul.f32 %v898, %v191
        %v905 = vrot.slane %v899, 5
        %v906 = vrot.slane %v900, 5
        %v907 = vsel %vm866, %v905, %v906
        %v908 = vrot.slane %v901, 5
        %v909 = vsel %vm866, %v906, %v908
        %910 = vrot.lane.b32.xlu0 %v907, 126
        %v911 = vpop.permute.xlu0 %910
        %912 = vrot.lane.b32.xlu0 %v909, 126
        %v913 = vpop.permute.xlu0 %912
        %v916 = vadd.f32 %v895, %v911
        %v917 = vadd.f32 %v896, %v913
        %s918 = sld [smem:[#allocation2 + $0x26]]
        %v919 = vstv %s918
        %v920 = vmul.f32 %v919, %v189
        %v921 = vmul.f32 %v919, %v190
        %v922 = vmul.f32 %v919, %v191
        %v926 = vrot.slane %v920, 5
        %v927 = vrot.slane %v921, 5
        %v928 = vsel %vm866, %v926, %v927
        %v929 = vrot.slane %v922, 5
        %v930 = vsel %vm866, %v927, %v929
        %931 = vrot.lane.b32.xlu0 %v928, 125
        %v932 = vpop.permute.xlu0 %931
        %933 = vrot.lane.b32.xlu0 %v930, 125
        %v934 = vpop.permute.xlu0 %933
        %v937 = vadd.f32 %v916, %v932
        %v938 = vadd.f32 %v917, %v934
        %s939 = sld [smem:[#allocation2 + $0x27]]
        %v940 = vstv %s939
        %v941 = vmul.f32 %v940, %v189
        %v942 = vmul.f32 %v940, %v190
        %v943 = vmul.f32 %v940, %v191
        %v947 = vrot.slane %v941, 5
        %v948 = vrot.slane %v942, 5
        %v949 = vsel %vm866, %v947, %v948
        %v950 = vrot.slane %v943, 5
        %v951 = vsel %vm866, %v948, %v950
        %952 = vrot.lane.b32.xlu0 %v949, 124
        %v953 = vpop.permute.xlu0 %952
        %954 = vrot.lane.b32.xlu0 %v951, 124
        %v955 = vpop.permute.xlu0 %954
        %v958 = vadd.f32 %v937, %v953
        %v959 = vadd.f32 %v938, %v955
        %s960 = sld [smem:[#allocation2 + $0x28]]
        %v961 = vstv %s960
        %v962 = vmul.f32 %v961, %v189
        %v963 = vmul.f32 %v961, %v190
        %v964 = vmul.f32 %v961, %v191
        %v968 = vrot.slane %v962, 5
        %v969 = vrot.slane %v963, 5
        %v970 = vsel %vm866, %v968, %v969
        %v971 = vrot.slane %v964, 5
        %v972 = vsel %vm866, %v969, %v971
        %973 = vrot.lane.b32.xlu0 %v970, 123
        %v974 = vpop.permute.xlu0 %973
        %975 = vrot.lane.b32.xlu0 %v972, 123
        %v976 = vpop.permute.xlu0 %975
        %v979 = vadd.f32 %v958, %v974
        %v980 = vadd.f32 %v959, %v976
        %s981 = sld [smem:[#allocation2 + $0x29]]
        %v982 = vstv %s981
        %v983 = vmul.f32 %v982, %v189
        %v984 = vmul.f32 %v982, %v190
        %v985 = vmul.f32 %v982, %v191
        %v989 = vrot.slane %v983, 5
        %v990 = vrot.slane %v984, 5
        %v991 = vsel %vm866, %v989, %v990
        %v992 = vrot.slane %v985, 5
        %v993 = vsel %vm866, %v990, %v992
        %994 = vrot.lane.b32.xlu0 %v991, 122
        %v995 = vpop.permute.xlu0 %994
        %996 = vrot.lane.b32.xlu0 %v993, 122
        %v997 = vpop.permute.xlu0 %996
        %v1000 = vadd.f32 %v979, %v995
        %v1001 = vadd.f32 %v980, %v997
        %s1002 = sld [smem:[#allocation2 + $0x2a]]
        %v1003 = vstv %s1002
        %v1004 = vmul.f32 %v1003, %v189
        %v1005 = vmul.f32 %v1003, %v190
        %v1006 = vmul.f32 %v1003, %v191
        %vm1010 = vcmask 1041408
        %v1011 = vrot.slane %v1004, 6
        %v1012 = vrot.slane %v1005, 6
        %v1013 = vsel %vm1010, %v1011, %v1012
        %v1014 = vrot.slane %v1006, 6
        %v1015 = vsel %vm1010, %v1012, %v1014
        %v1018 = vadd.f32 %v1000, %v1013
        %v1019 = vadd.f32 %v1001, %v1015
        %s1020 = sld [smem:[#allocation2 + $0x2b]]
        %v1021 = vstv %s1020
        %v1022 = vmul.f32 %v1021, %v189
        %v1023 = vmul.f32 %v1021, %v190
        %v1024 = vmul.f32 %v1021, %v191
        %v1028 = vrot.slane %v1022, 6
        %v1029 = vrot.slane %v1023, 6
        %v1030 = vsel %vm1010, %v1028, %v1029
        %v1031 = vrot.slane %v1024, 6
        %v1032 = vsel %vm1010, %v1029, %v1031
        %1033 = vrot.lane.b32.xlu0 %v1030, 127
        %v1034 = vpop.permute.xlu0 %1033
        %1035 = vrot.lane.b32.xlu0 %v1032, 127
        %v1036 = vpop.permute.xlu0 %1035
        %v1039 = vadd.f32 %v1018, %v1034
        %v1040 = vadd.f32 %v1019, %v1036
        %s1041 = sld [smem:[#allocation2 + $0x2c]]
        %v1042 = vstv %s1041
        %v1043 = vmul.f32 %v1042, %v189
        %v1044 = vmul.f32 %v1042, %v190
        %v1045 = vmul.f32 %v1042, %v191
        %v1049 = vrot.slane %v1043, 6
        %v1050 = vrot.slane %v1044, 6
        %v1051 = vsel %vm1010, %v1049, %v1050
        %v1052 = vrot.slane %v1045, 6
        %v1053 = vsel %vm1010, %v1050, %v1052
        %1054 = vrot.lane.b32.xlu0 %v1051, 126
        %v1055 = vpop.permute.xlu0 %1054
        %1056 = vrot.lane.b32.xlu0 %v1053, 126
        %v1057 = vpop.permute.xlu0 %1056
        %v1060 = vadd.f32 %v1039, %v1055
        %v1061 = vadd.f32 %v1040, %v1057
        %s1062 = sld [smem:[#allocation2 + $0x2d]]
        %v1063 = vstv %s1062
        %v1064 = vmul.f32 %v1063, %v189
        %v1065 = vmul.f32 %v1063, %v190
        %v1066 = vmul.f32 %v1063, %v191
        %v1070 = vrot.slane %v1064, 6
        %v1071 = vrot.slane %v1065, 6
        %v1072 = vsel %vm1010, %v1070, %v1071
        %v1073 = vrot.slane %v1066, 6
        %v1074 = vsel %vm1010, %v1071, %v1073
        %1075 = vrot.lane.b32.xlu0 %v1072, 125
        %v1076 = vpop.permute.xlu0 %1075
        %1077 = vrot.lane.b32.xlu0 %v1074, 125
        %v1078 = vpop.permute.xlu0 %1077
        %v1081 = vadd.f32 %v1060, %v1076
        %v1082 = vadd.f32 %v1061, %v1078
        %s1083 = sld [smem:[#allocation2 + $0x2e]]
        %v1084 = vstv %s1083
        %v1085 = vmul.f32 %v1084, %v189
        %v1086 = vmul.f32 %v1084, %v190
        %v1087 = vmul.f32 %v1084, %v191
        %v1091 = vrot.slane %v1085, 6
        %v1092 = vrot.slane %v1086, 6
        %v1093 = vsel %vm1010, %v1091, %v1092
        %v1094 = vrot.slane %v1087, 6
        %v1095 = vsel %vm1010, %v1092, %v1094
        %1096 = vrot.lane.b32.xlu0 %v1093, 124
        %v1097 = vpop.permute.xlu0 %1096
        %1098 = vrot.lane.b32.xlu0 %v1095, 124
        %v1099 = vpop.permute.xlu0 %1098
        %v1102 = vadd.f32 %v1081, %v1097
        %v1103 = vadd.f32 %v1082, %v1099
        %s1104 = sld [smem:[#allocation2 + $0x2f]]
        %v1105 = vstv %s1104
        %v1106 = vmul.f32 %v1105, %v189
        %v1107 = vmul.f32 %v1105, %v190
        %v1108 = vmul.f32 %v1105, %v191
        %v1112 = vrot.slane %v1106, 6
        %v1113 = vrot.slane %v1107, 6
        %v1114 = vsel %vm1010, %v1112, %v1113
        %v1115 = vrot.slane %v1108, 6
        %v1116 = vsel %vm1010, %v1113, %v1115
        %1117 = vrot.lane.b32.xlu0 %v1114, 123
        %v1118 = vpop.permute.xlu0 %1117
        %1119 = vrot.lane.b32.xlu0 %v1116, 123
        %v1120 = vpop.permute.xlu0 %1119
        %v1123 = vadd.f32 %v1102, %v1118
        %v1124 = vadd.f32 %v1103, %v1120
        %s1125 = sld [smem:[#allocation2 + $0x30]]
        %v1126 = vstv %s1125
        %v1127 = vmul.f32 %v1126, %v189
        %v1128 = vmul.f32 %v1126, %v190
        %v1129 = vmul.f32 %v1126, %v191
        %v1133 = vrot.slane %v1127, 6
        %v1134 = vrot.slane %v1128, 6
        %v1135 = vsel %vm1010, %v1133, %v1134
        %v1136 = vrot.slane %v1129, 6
        %v1137 = vsel %vm1010, %v1134, %v1136
        %1138 = vrot.lane.b32.xlu0 %v1135, 122
        %v1139 = vpop.permute.xlu0 %1138
        %1140 = vrot.lane.b32.xlu0 %v1137, 122
        %v1141 = vpop.permute.xlu0 %1140
        %v1144 = vadd.f32 %v1123, %v1139
        %v1145 = vadd.f32 %v1124, %v1141
        %s1146 = sld [smem:[#allocation2 + $0x31]]
        %v1147 = vstv %s1146
        %v1148 = vmul.f32 %v1147, %v186
        %v1149 = vmul.f32 %v1147, %v187
        %v1150 = vadd.f32 %v1144, %v1148
        %v1151 = vadd.f32 %v1145, %v1149
        %s1152 = sld [smem:[#allocation2 + $0x32]]
        %v1153 = vstv %s1152
        %v1154 = vmul.f32 %v1153, %v186
        %v1155 = vmul.f32 %v1153, %v187
        %1158 = vrot.lane.b32.xlu0 %v1154, 127
        %v1159 = vpop.permute.xlu0 %1158
        %1160 = vrot.lane.b32.xlu0 %v1155, 127
        %v1161 = vpop.permute.xlu0 %1160
        %v1164 = vadd.f32 %v1150, %v1159
        %v1165 = vadd.f32 %v1151, %v1161
        %s1166 = sld [smem:[#allocation2 + $0x33]]
        %v1167 = vstv %s1166
        %v1168 = vmul.f32 %v1167, %v186
        %v1169 = vmul.f32 %v1167, %v187
        %1172 = vrot.lane.b32.xlu0 %v1168, 126
        %v1173 = vpop.permute.xlu0 %1172
        %1174 = vrot.lane.b32.xlu0 %v1169, 126
        %v1175 = vpop.permute.xlu0 %1174
        %v1178 = vadd.f32 %v1164, %v1173
        %v1179 = vadd.f32 %v1165, %v1175
        %s1180 = sld [smem:[#allocation2 + $0x34]]
        %v1181 = vstv %s1180
        %v1182 = vmul.f32 %v1181, %v186
        %v1183 = vmul.f32 %v1181, %v187
        %1186 = vrot.lane.b32.xlu0 %v1182, 125
        %v1187 = vpop.permute.xlu0 %1186
        %1188 = vrot.lane.b32.xlu0 %v1183, 125
        %v1189 = vpop.permute.xlu0 %1188
        %v1192 = vadd.f32 %v1178, %v1187
        %v1193 = vadd.f32 %v1179, %v1189
        %s1194 = sld [smem:[#allocation2 + $0x35]]
        %v1195 = vstv %s1194
        %v1196 = vmul.f32 %v1195, %v186
        %v1197 = vmul.f32 %v1195, %v187
        %1200 = vrot.lane.b32.xlu0 %v1196, 124
        %v1201 = vpop.permute.xlu0 %1200
        %1202 = vrot.lane.b32.xlu0 %v1197, 124
        %v1203 = vpop.permute.xlu0 %1202
        %v1206 = vadd.f32 %v1192, %v1201
        %v1207 = vadd.f32 %v1193, %v1203
        %s1208 = sld [smem:[#allocation2 + $0x36]]
        %v1209 = vstv %s1208
        %v1210 = vmul.f32 %v1209, %v186
        %v1211 = vmul.f32 %v1209, %v187
        %1214 = vrot.lane.b32.xlu0 %v1210, 123
        %v1215 = vpop.permute.xlu0 %1214
        %1216 = vrot.lane.b32.xlu0 %v1211, 123
        %v1217 = vpop.permute.xlu0 %1216
        %v1220 = vadd.f32 %v1206, %v1215
        %v1221 = vadd.f32 %v1207, %v1217
        %s1222 = sld [smem:[#allocation2 + $0x37]]
        %v1223 = vstv %s1222
        %v1224 = vmul.f32 %v1223, %v186
        %v1225 = vmul.f32 %v1223, %v187
        %1228 = vrot.lane.b32.xlu0 %v1224, 122
        %v1229 = vpop.permute.xlu0 %1228
        %1230 = vrot.lane.b32.xlu0 %v1225, 122
        %v1231 = vpop.permute.xlu0 %1230
        %v1234 = vadd.f32 %v1220, %v1229
        %v1235 = vadd.f32 %v1221, %v1231
        %s1236 = sld [smem:[#allocation2 + $0x38]]
        %v1237 = vstv %s1236
        %v1238 = vmul.f32 %v1237, %v186
        %v1239 = vmul.f32 %v1237, %v187
        %v1240 = vmul.f32 %v1237, %v188
        %v1244 = vrot.slane %v1238, 1
        %v1245 = vrot.slane %v1239, 1
        %v1246 = vsel %vm290, %v1244, %v1245
        %v1247 = vrot.slane %v1240, 1
        %v1248 = vsel %vm290, %v1245, %v1247
        %v1251 = vadd.f32 %v1234, %v1246
        %v1252 = vadd.f32 %v1235, %v1248
        %s1253 = sld [smem:[#allocation2 + $0x39]]
        %v1254 = vstv %s1253
        %v1255 = vmul.f32 %v1254, %v186
        %v1256 = vmul.f32 %v1254, %v187
        %v1257 = vmul.f32 %v1254, %v188
        %v1261 = vrot.slane %v1255, 1
        %v1262 = vrot.slane %v1256, 1
        %v1263 = vsel %vm290, %v1261, %v1262
        %v1264 = vrot.slane %v1257, 1
        %v1265 = vsel %vm290, %v1262, %v1264
        %1266 = vrot.lane.b32.xlu0 %v1263, 127
        %v1267 = vpop.permute.xlu0 %1266
        %1268 = vrot.lane.b32.xlu0 %v1265, 127
        %v1269 = vpop.permute.xlu0 %1268
        %v1272 = vadd.f32 %v1251, %v1267
        %v1273 = vadd.f32 %v1252, %v1269
        %s1274 = sld [smem:[#allocation2 + $0x3a]]
        %v1275 = vstv %s1274
        %v1276 = vmul.f32 %v1275, %v186
        %v1277 = vmul.f32 %v1275, %v187
        %v1278 = vmul.f32 %v1275, %v188
        %v1282 = vrot.slane %v1276, 1
        %v1283 = vrot.slane %v1277, 1
        %v1284 = vsel %vm290, %v1282, %v1283
        %v1285 = vrot.slane %v1278, 1
        %v1286 = vsel %vm290, %v1283, %v1285
        %1287 = vrot.lane.b32.xlu0 %v1284, 126
        %v1288 = vpop.permute.xlu0 %1287
        %1289 = vrot.lane.b32.xlu0 %v1286, 126
        %v1290 = vpop.permute.xlu0 %1289
        %v1293 = vadd.f32 %v1272, %v1288
        %v1294 = vadd.f32 %v1273, %v1290
        %s1295 = sld [smem:[#allocation2 + $0x3b]]
        %v1296 = vstv %s1295
        %v1297 = vmul.f32 %v1296, %v186
        %v1298 = vmul.f32 %v1296, %v187
        %v1299 = vmul.f32 %v1296, %v188
        %v1303 = vrot.slane %v1297, 1
        %v1304 = vrot.slane %v1298, 1
        %v1305 = vsel %vm290, %v1303, %v1304
        %v1306 = vrot.slane %v1299, 1
        %v1307 = vsel %vm290, %v1304, %v1306
        %1308 = vrot.lane.b32.xlu0 %v1305, 125
        %v1309 = vpop.permute.xlu0 %1308
        %1310 = vrot.lane.b32.xlu0 %v1307, 125
        %v1311 = vpop.permute.xlu0 %1310
        %v1314 = vadd.f32 %v1293, %v1309
        %v1315 = vadd.f32 %v1294, %v1311
        %s1316 = sld [smem:[#allocation2 + $0x3c]]
        %v1317 = vstv %s1316
        %v1318 = vmul.f32 %v1317, %v186
        %v1319 = vmul.f32 %v1317, %v187
        %v1320 = vmul.f32 %v1317, %v188
        %v1324 = vrot.slane %v1318, 1
        %v1325 = vrot.slane %v1319, 1
        %v1326 = vsel %vm290, %v1324, %v1325
        %v1327 = vrot.slane %v1320, 1
        %v1328 = vsel %vm290, %v1325, %v1327
        %1329 = vrot.lane.b32.xlu0 %v1326, 124
        %v1330 = vpop.permute.xlu0 %1329
        %1331 = vrot.lane.b32.xlu0 %v1328, 124
        %v1332 = vpop.permute.xlu0 %1331
        %v1335 = vadd.f32 %v1314, %v1330
        %v1336 = vadd.f32 %v1315, %v1332
        %s1337 = sld [smem:[#allocation2 + $0x3d]]
        %v1338 = vstv %s1337
        %v1339 = vmul.f32 %v1338, %v186
        %v1340 = vmul.f32 %v1338, %v187
        %v1341 = vmul.f32 %v1338, %v188
        %v1345 = vrot.slane %v1339, 1
        %v1346 = vrot.slane %v1340, 1
        %v1347 = vsel %vm290, %v1345, %v1346
        %v1348 = vrot.slane %v1341, 1
        %v1349 = vsel %vm290, %v1346, %v1348
        %1350 = vrot.lane.b32.xlu0 %v1347, 123
        %v1351 = vpop.permute.xlu0 %1350
        %1352 = vrot.lane.b32.xlu0 %v1349, 123
        %v1353 = vpop.permute.xlu0 %1352
        %v1356 = vadd.f32 %v1335, %v1351
        %v1357 = vadd.f32 %v1336, %v1353
        %s1358 = sld [smem:[#allocation2 + $0x3e]]
        %v1359 = vstv %s1358
        %v1360 = vmul.f32 %v1359, %v186
        %v1361 = vmul.f32 %v1359, %v187
        %v1362 = vmul.f32 %v1359, %v188
        %v1366 = vrot.slane %v1360, 1
        %v1367 = vrot.slane %v1361, 1
        %v1368 = vsel %vm290, %v1366, %v1367
        %v1369 = vrot.slane %v1362, 1
        %v1370 = vsel %vm290, %v1367, %v1369
        %1371 = vrot.lane.b32.xlu0 %v1368, 122
        %v1372 = vpop.permute.xlu0 %1371
        %1373 = vrot.lane.b32.xlu0 %v1370, 122
        %v1374 = vpop.permute.xlu0 %1373
        %v1377 = vadd.f32 %v1356, %v1372
        %v1378 = vadd.f32 %v1357, %v1374
        %s1379 = sld [smem:[#allocation2 + $0x3f]]
        %v1380 = vstv %s1379
        %v1381 = vmul.f32 %v1380, %v186
        %v1382 = vmul.f32 %v1380, %v187
        %v1383 = vmul.f32 %v1380, %v188
        %v1387 = vrot.slane %v1381, 2
        %v1388 = vrot.slane %v1382, 2
        %v1389 = vsel %vm434, %v1387, %v1388
        %v1390 = vrot.slane %v1383, 2
        %v1391 = vsel %vm434, %v1388, %v1390
        %v1394 = vadd.f32 %v1377, %v1389
        %v1395 = vadd.f32 %v1378, %v1391
        %s1396 = sld [smem:[#allocation2 + $0x40]]
        %v1397 = vstv %s1396
        %v1398 = vmul.f32 %v1397, %v186
        %v1399 = vmul.f32 %v1397, %v187
        %v1400 = vmul.f32 %v1397, %v188
        %v1404 = vrot.slane %v1398, 2
        %v1405 = vrot.slane %v1399, 2
        %v1406 = vsel %vm434, %v1404, %v1405
        %v1407 = vrot.slane %v1400, 2
        %v1408 = vsel %vm434, %v1405, %v1407
        %1409 = vrot.lane.b32.xlu0 %v1406, 127
        %v1410 = vpop.permute.xlu0 %1409
        %1411 = vrot.lane.b32.xlu0 %v1408, 127
        %v1412 = vpop.permute.xlu0 %1411
        %v1415 = vadd.f32 %v1394, %v1410
        %v1416 = vadd.f32 %v1395, %v1412
        %s1417 = sld [smem:[#allocation2 + $0x41]]
        %v1418 = vstv %s1417
        %v1419 = vmul.f32 %v1418, %v186
        %v1420 = vmul.f32 %v1418, %v187
        %v1421 = vmul.f32 %v1418, %v188
        %v1425 = vrot.slane %v1419, 2
        %v1426 = vrot.slane %v1420, 2
        %v1427 = vsel %vm434, %v1425, %v1426
        %v1428 = vrot.slane %v1421, 2
        %v1429 = vsel %vm434, %v1426, %v1428
        %1430 = vrot.lane.b32.xlu0 %v1427, 126
        %v1431 = vpop.permute.xlu0 %1430
        %1432 = vrot.lane.b32.xlu0 %v1429, 126
        %v1433 = vpop.permute.xlu0 %1432
        %v1436 = vadd.f32 %v1415, %v1431
        %v1437 = vadd.f32 %v1416, %v1433
        %s1438 = sld [smem:[#allocation2 + $0x42]]
        %v1439 = vstv %s1438
        %v1440 = vmul.f32 %v1439, %v186
        %v1441 = vmul.f32 %v1439, %v187
        %v1442 = vmul.f32 %v1439, %v188
        %v1446 = vrot.slane %v1440, 2
        %v1447 = vrot.slane %v1441, 2
        %v1448 = vsel %vm434, %v1446, %v1447
        %v1449 = vrot.slane %v1442, 2
        %v1450 = vsel %vm434, %v1447, %v1449
        %1451 = vrot.lane.b32.xlu0 %v1448, 125
        %v1452 = vpop.permute.xlu0 %1451
        %1453 = vrot.lane.b32.xlu0 %v1450, 125
        %v1454 = vpop.permute.xlu0 %1453
        %v1457 = vadd.f32 %v1436, %v1452
        %v1458 = vadd.f32 %v1437, %v1454
        %s1459 = sld [smem:[#allocation2 + $0x43]]
        %v1460 = vstv %s1459
        %v1461 = vmul.f32 %v1460, %v186
        %v1462 = vmul.f32 %v1460, %v187
        %v1463 = vmul.f32 %v1460, %v188
        %v1467 = vrot.slane %v1461, 2
        %v1468 = vrot.slane %v1462, 2
        %v1469 = vsel %vm434, %v1467, %v1468
        %v1470 = vrot.slane %v1463, 2
        %v1471 = vsel %vm434, %v1468, %v1470
        %1472 = vrot.lane.b32.xlu0 %v1469, 124
        %v1473 = vpop.permute.xlu0 %1472
        %1474 = vrot.lane.b32.xlu0 %v1471, 124
        %v1475 = vpop.permute.xlu0 %1474
        %v1478 = vadd.f32 %v1457, %v1473
        %v1479 = vadd.f32 %v1458, %v1475
        %s1480 = sld [smem:[#allocation2 + $0x44]]
        %v1481 = vstv %s1480
        %v1482 = vmul.f32 %v1481, %v186
        %v1483 = vmul.f32 %v1481, %v187
        %v1484 = vmul.f32 %v1481, %v188
        %v1488 = vrot.slane %v1482, 2
        %v1489 = vrot.slane %v1483, 2
        %v1490 = vsel %vm434, %v1488, %v1489
        %v1491 = vrot.slane %v1484, 2
        %v1492 = vsel %vm434, %v1489, %v1491
        %1493 = vrot.lane.b32.xlu0 %v1490, 123
        %v1494 = vpop.permute.xlu0 %1493
        %1495 = vrot.lane.b32.xlu0 %v1492, 123
        %v1496 = vpop.permute.xlu0 %1495
        %v1499 = vadd.f32 %v1478, %v1494
        %v1500 = vadd.f32 %v1479, %v1496
        %s1501 = sld [smem:[#allocation2 + $0x45]]
        %v1502 = vstv %s1501
        %v1503 = vmul.f32 %v1502, %v186
        %v1504 = vmul.f32 %v1502, %v187
        %v1505 = vmul.f32 %v1502, %v188
        %v1509 = vrot.slane %v1503, 2
        %v1510 = vrot.slane %v1504, 2
        %v1511 = vsel %vm434, %v1509, %v1510
        %v1512 = vrot.slane %v1505, 2
        %v1513 = vsel %vm434, %v1510, %v1512
        %1514 = vrot.lane.b32.xlu0 %v1511, 122
        %v1515 = vpop.permute.xlu0 %1514
        %1516 = vrot.lane.b32.xlu0 %v1513, 122
        %v1517 = vpop.permute.xlu0 %1516
        %v1520 = vadd.f32 %v1499, %v1515
        %v1521 = vadd.f32 %v1500, %v1517
        %s1522 = sld [smem:[#allocation2 + $0x46]]
        %v1523 = vstv %s1522
        %v1524 = vmul.f32 %v1523, %v186
        %v1525 = vmul.f32 %v1523, %v187
        %v1526 = vmul.f32 %v1523, %v188
        %v1530 = vrot.slane %v1524, 3
        %v1531 = vrot.slane %v1525, 3
        %v1532 = vsel %vm578, %v1530, %v1531
        %v1533 = vrot.slane %v1526, 3
        %v1534 = vsel %vm578, %v1531, %v1533
        %v1537 = vadd.f32 %v1520, %v1532
        %v1538 = vadd.f32 %v1521, %v1534
        %s1539 = sld [smem:[#allocation2 + $0x47]]
        %v1540 = vstv %s1539
        %v1541 = vmul.f32 %v1540, %v186
        %v1542 = vmul.f32 %v1540, %v187
        %v1543 = vmul.f32 %v1540, %v188
        %v1547 = vrot.slane %v1541, 3
        %v1548 = vrot.slane %v1542, 3
        %v1549 = vsel %vm578, %v1547, %v1548
        %v1550 = vrot.slane %v1543, 3
        %v1551 = vsel %vm578, %v1548, %v1550
        %1552 = vrot.lane.b32.xlu0 %v1549, 127
        %v1553 = vpop.permute.xlu0 %1552
        %1554 = vrot.lane.b32.xlu0 %v1551, 127
        %v1555 = vpop.permute.xlu0 %1554
        %v1558 = vadd.f32 %v1537, %v1553
        %v1559 = vadd.f32 %v1538, %v1555
        %s1560 = sld [smem:[#allocation2 + $0x48]]
        %v1561 = vstv %s1560
        %v1562 = vmul.f32 %v1561, %v186
        %v1563 = vmul.f32 %v1561, %v187
        %v1564 = vmul.f32 %v1561, %v188
        %v1568 = vrot.slane %v1562, 3
        %v1569 = vrot.slane %v1563, 3
        %v1570 = vsel %vm578, %v1568, %v1569
        %v1571 = vrot.slane %v1564, 3
        %v1572 = vsel %vm578, %v1569, %v1571
        %1573 = vrot.lane.b32.xlu0 %v1570, 126
        %v1574 = vpop.permute.xlu0 %1573
        %1575 = vrot.lane.b32.xlu0 %v1572, 126
        %v1576 = vpop.permute.xlu0 %1575
        %v1579 = vadd.f32 %v1558, %v1574
        %v1580 = vadd.f32 %v1559, %v1576
        %s1581 = sld [smem:[#allocation2 + $0x49]]
        %v1582 = vstv %s1581
        %v1583 = vmul.f32 %v1582, %v186
        %v1584 = vmul.f32 %v1582, %v187
        %v1585 = vmul.f32 %v1582, %v188
        %v1589 = vrot.slane %v1583, 3
        %v1590 = vrot.slane %v1584, 3
        %v1591 = vsel %vm578, %v1589, %v1590
        %v1592 = vrot.slane %v1585, 3
        %v1593 = vsel %vm578, %v1590, %v1592
        %1594 = vrot.lane.b32.xlu0 %v1591, 125
        %v1595 = vpop.permute.xlu0 %1594
        %1596 = vrot.lane.b32.xlu0 %v1593, 125
        %v1597 = vpop.permute.xlu0 %1596
        %v1600 = vadd.f32 %v1579, %v1595
        %v1601 = vadd.f32 %v1580, %v1597
        %s1602 = sld [smem:[#allocation2 + $0x4a]]
        %v1603 = vstv %s1602
        %v1604 = vmul.f32 %v1603, %v186
        %v1605 = vmul.f32 %v1603, %v187
        %v1606 = vmul.f32 %v1603, %v188
        %v1610 = vrot.slane %v1604, 3
        %v1611 = vrot.slane %v1605, 3
        %v1612 = vsel %vm578, %v1610, %v1611
        %v1613 = vrot.slane %v1606, 3
        %v1614 = vsel %vm578, %v1611, %v1613
        %1615 = vrot.lane.b32.xlu0 %v1612, 124
        %v1616 = vpop.permute.xlu0 %1615
        %1617 = vrot.lane.b32.xlu0 %v1614, 124
        %v1618 = vpop.permute.xlu0 %1617
        %v1621 = vadd.f32 %v1600, %v1616
        %v1622 = vadd.f32 %v1601, %v1618
        %s1623 = sld [smem:[#allocation2 + $0x4b]]
        %v1624 = vstv %s1623
        %v1625 = vmul.f32 %v1624, %v186
        %v1626 = vmul.f32 %v1624, %v187
        %v1627 = vmul.f32 %v1624, %v188
        %v1631 = vrot.slane %v1625, 3
        %v1632 = vrot.slane %v1626, 3
        %v1633 = vsel %vm578, %v1631, %v1632
        %v1634 = vrot.slane %v1627, 3
        %v1635 = vsel %vm578, %v1632, %v1634
        %1636 = vrot.lane.b32.xlu0 %v1633, 123
        %v1637 = vpop.permute.xlu0 %1636
        %1638 = vrot.lane.b32.xlu0 %v1635, 123
        %v1639 = vpop.permute.xlu0 %1638
        %v1642 = vadd.f32 %v1621, %v1637
        %v1643 = vadd.f32 %v1622, %v1639
        %s1644 = sld [smem:[#allocation2 + $0x4c]]
        %v1645 = vstv %s1644
        %v1646 = vmul.f32 %v1645, %v186
        %v1647 = vmul.f32 %v1645, %v187
        %v1648 = vmul.f32 %v1645, %v188
        %v1652 = vrot.slane %v1646, 3
        %v1653 = vrot.slane %v1647, 3
        %v1654 = vsel %vm578, %v1652, %v1653
        %v1655 = vrot.slane %v1648, 3
        %v1656 = vsel %vm578, %v1653, %v1655
        %1657 = vrot.lane.b32.xlu0 %v1654, 122
        %v1658 = vpop.permute.xlu0 %1657
        %1659 = vrot.lane.b32.xlu0 %v1656, 122
        %v1660 = vpop.permute.xlu0 %1659
        %v1663 = vadd.f32 %v1642, %v1658
        %v1664 = vadd.f32 %v1643, %v1660
        %s1665 = sld [smem:[#allocation2 + $0x4d]]
        %v1666 = vstv %s1665
        %v1667 = vmul.f32 %v1666, %v186
        %v1668 = vmul.f32 %v1666, %v187
        %v1669 = vmul.f32 %v1666, %v188
        %v1673 = vrot.slane %v1667, 4
        %v1674 = vrot.slane %v1668, 4
        %v1675 = vsel %vm722, %v1673, %v1674
        %v1676 = vrot.slane %v1669, 4
        %v1677 = vsel %vm722, %v1674, %v1676
        %v1680 = vadd.f32 %v1663, %v1675
        %v1681 = vadd.f32 %v1664, %v1677
        %s1682 = sld [smem:[#allocation2 + $0x4e]]
        %v1683 = vstv %s1682
        %v1684 = vmul.f32 %v1683, %v186
        %v1685 = vmul.f32 %v1683, %v187
        %v1686 = vmul.f32 %v1683, %v188
        %v1690 = vrot.slane %v1684, 4
        %v1691 = vrot.slane %v1685, 4
        %v1692 = vsel %vm722, %v1690, %v1691
        %v1693 = vrot.slane %v1686, 4
        %v1694 = vsel %vm722, %v1691, %v1693
        %1695 = vrot.lane.b32.xlu0 %v1692, 127
        %v1696 = vpop.permute.xlu0 %1695
        %1697 = vrot.lane.b32.xlu0 %v1694, 127
        %v1698 = vpop.permute.xlu0 %1697
        %v1701 = vadd.f32 %v1680, %v1696
        %v1702 = vadd.f32 %v1681, %v1698
        %s1703 = sld [smem:[#allocation2 + $0x4f]]
        %v1704 = vstv %s1703
        %v1705 = vmul.f32 %v1704, %v186
        %v1706 = vmul.f32 %v1704, %v187
        %v1707 = vmul.f32 %v1704, %v188
        %v1711 = vrot.slane %v1705, 4
        %v1712 = vrot.slane %v1706, 4
        %v1713 = vsel %vm722, %v1711, %v1712
        %v1714 = vrot.slane %v1707, 4
        %v1715 = vsel %vm722, %v1712, %v1714
        %1716 = vrot.lane.b32.xlu0 %v1713, 126
        %v1717 = vpop.permute.xlu0 %1716
        %1718 = vrot.lane.b32.xlu0 %v1715, 126
        %v1719 = vpop.permute.xlu0 %1718
        %v1722 = vadd.f32 %v1701, %v1717
        %v1723 = vadd.f32 %v1702, %v1719
        %s1724 = sld [smem:[#allocation2 + $0x50]]
        %v1725 = vstv %s1724
        %v1726 = vmul.f32 %v1725, %v186
        %v1727 = vmul.f32 %v1725, %v187
        %v1728 = vmul.f32 %v1725, %v188
        %v1732 = vrot.slane %v1726, 4
        %v1733 = vrot.slane %v1727, 4
        %v1734 = vsel %vm722, %v1732, %v1733
        %v1735 = vrot.slane %v1728, 4
        %v1736 = vsel %vm722, %v1733, %v1735
        %1737 = vrot.lane.b32.xlu0 %v1734, 125
        %v1738 = vpop.permute.xlu0 %1737
        %1739 = vrot.lane.b32.xlu0 %v1736, 125
        %v1740 = vpop.permute.xlu0 %1739
        %v1743 = vadd.f32 %v1722, %v1738
        %v1744 = vadd.f32 %v1723, %v1740
        %s1745 = sld [smem:[#allocation2 + $0x51]]
        %v1746 = vstv %s1745
        %v1747 = vmul.f32 %v1746, %v186
        %v1748 = vmul.f32 %v1746, %v187
        %v1749 = vmul.f32 %v1746, %v188
        %v1753 = vrot.slane %v1747, 4
        %v1754 = vrot.slane %v1748, 4
        %v1755 = vsel %vm722, %v1753, %v1754
        %v1756 = vrot.slane %v1749, 4
        %v1757 = vsel %vm722, %v1754, %v1756
        %1758 = vrot.lane.b32.xlu0 %v1755, 124
        %v1759 = vpop.permute.xlu0 %1758
        %1760 = vrot.lane.b32.xlu0 %v1757, 124
        %v1761 = vpop.permute.xlu0 %1760
        %v1764 = vadd.f32 %v1743, %v1759
        %v1765 = vadd.f32 %v1744, %v1761
        %s1766 = sld [smem:[#allocation2 + $0x52]]
        %v1767 = vstv %s1766
        %v1768 = vmul.f32 %v1767, %v186
        %v1769 = vmul.f32 %v1767, %v187
        %v1770 = vmul.f32 %v1767, %v188
        %v1774 = vrot.slane %v1768, 4
        %v1775 = vrot.slane %v1769, 4
        %v1776 = vsel %vm722, %v1774, %v1775
        %v1777 = vrot.slane %v1770, 4
        %v1778 = vsel %vm722, %v1775, %v1777
        %1779 = vrot.lane.b32.xlu0 %v1776, 123
        %v1780 = vpop.permute.xlu0 %1779
        %1781 = vrot.lane.b32.xlu0 %v1778, 123
        %v1782 = vpop.permute.xlu0 %1781
        %v1785 = vadd.f32 %v1764, %v1780
        %v1786 = vadd.f32 %v1765, %v1782
        %s1787 = sld [smem:[#allocation2 + $0x53]]
        %v1788 = vstv %s1787
        %v1789 = vmul.f32 %v1788, %v186
        %v1790 = vmul.f32 %v1788, %v187
        %v1791 = vmul.f32 %v1788, %v188
        %v1795 = vrot.slane %v1789, 4
        %v1796 = vrot.slane %v1790, 4
        %v1797 = vsel %vm722, %v1795, %v1796
        %v1798 = vrot.slane %v1791, 4
        %v1799 = vsel %vm722, %v1796, %v1798
        %1800 = vrot.lane.b32.xlu0 %v1797, 122
        %v1801 = vpop.permute.xlu0 %1800
        %1802 = vrot.lane.b32.xlu0 %v1799, 122
        %v1803 = vpop.permute.xlu0 %1802
        %v1806 = vadd.f32 %v1785, %v1801
        %v1807 = vadd.f32 %v1786, %v1803
        %s1808 = sld [smem:[#allocation2 + $0x54]]
        %v1809 = vstv %s1808
        %v1810 = vmul.f32 %v1809, %v186
        %v1811 = vmul.f32 %v1809, %v187
        %v1812 = vmul.f32 %v1809, %v188
        %v1816 = vrot.slane %v1810, 5
        %v1817 = vrot.slane %v1811, 5
        %v1818 = vsel %vm866, %v1816, %v1817
        %v1819 = vrot.slane %v1812, 5
        %v1820 = vsel %vm866, %v1817, %v1819
        %v1823 = vadd.f32 %v1806, %v1818
        %v1824 = vadd.f32 %v1807, %v1820
        %s1825 = sld [smem:[#allocation2 + $0x55]]
        %v1826 = vstv %s1825
        %v1827 = vmul.f32 %v1826, %v186
        %v1828 = vmul.f32 %v1826, %v187
        %v1829 = vmul.f32 %v1826, %v188
        %v1833 = vrot.slane %v1827, 5
        %v1834 = vrot.slane %v1828, 5
        %v1835 = vsel %vm866, %v1833, %v1834
        %v1836 = vrot.slane %v1829, 5
        %v1837 = vsel %vm866, %v1834, %v1836
        %1838 = vrot.lane.b32.xlu0 %v1835, 127
        %v1839 = vpop.permute.xlu0 %1838
        %1840 = vrot.lane.b32.xlu0 %v1837, 127
        %v1841 = vpop.permute.xlu0 %1840
        %v1844 = vadd.f32 %v1823, %v1839
        %v1845 = vadd.f32 %v1824, %v1841
        %s1846 = sld [smem:[#allocation2 + $0x56]]
        %v1847 = vstv %s1846
        %v1848 = vmul.f32 %v1847, %v186
        %v1849 = vmul.f32 %v1847, %v187
        %v1850 = vmul.f32 %v1847, %v188
        %v1854 = vrot.slane %v1848, 5
        %v1855 = vrot.slane %v1849, 5
        %v1856 = vsel %vm866, %v1854, %v1855
        %v1857 = vrot.slane %v1850, 5
        %v1858 = vsel %vm866, %v1855, %v1857
        %1859 = vrot.lane.b32.xlu0 %v1856, 126
        %v1860 = vpop.permute.xlu0 %1859
        %1861 = vrot.lane.b32.xlu0 %v1858, 126
        %v1862 = vpop.permute.xlu0 %1861
        %v1865 = vadd.f32 %v1844, %v1860
        %v1866 = vadd.f32 %v1845, %v1862
        %s1867 = sld [smem:[#allocation2 + $0x57]]
        %v1868 = vstv %s1867
        %v1869 = vmul.f32 %v1868, %v186
        %v1870 = vmul.f32 %v1868, %v187
        %v1871 = vmul.f32 %v1868, %v188
        %v1875 = vrot.slane %v1869, 5
        %v1876 = vrot.slane %v1870, 5
        %v1877 = vsel %vm866, %v1875, %v1876
        %v1878 = vrot.slane %v1871, 5
        %v1879 = vsel %vm866, %v1876, %v1878
        %1880 = vrot.lane.b32.xlu0 %v1877, 125
        %v1881 = vpop.permute.xlu0 %1880
        %1882 = vrot.lane.b32.xlu0 %v1879, 125
        %v1883 = vpop.permute.xlu0 %1882
        %v1886 = vadd.f32 %v1865, %v1881
        %v1887 = vadd.f32 %v1866, %v1883
        %s1888 = sld [smem:[#allocation2 + $0x58]]
        %v1889 = vstv %s1888
        %v1890 = vmul.f32 %v1889, %v186
        %v1891 = vmul.f32 %v1889, %v187
        %v1892 = vmul.f32 %v1889, %v188
        %v1896 = vrot.slane %v1890, 5
        %v1897 = vrot.slane %v1891, 5
        %v1898 = vsel %vm866, %v1896, %v1897
        %v1899 = vrot.slane %v1892, 5
        %v1900 = vsel %vm866, %v1897, %v1899
        %1901 = vrot.lane.b32.xlu0 %v1898, 124
        %v1902 = vpop.permute.xlu0 %1901
        %1903 = vrot.lane.b32.xlu0 %v1900, 124
        %v1904 = vpop.permute.xlu0 %1903
        %v1907 = vadd.f32 %v1886, %v1902
        %v1908 = vadd.f32 %v1887, %v1904
        %s1909 = sld [smem:[#allocation2 + $0x59]]
        %v1910 = vstv %s1909
        %v1911 = vmul.f32 %v1910, %v186
        %v1912 = vmul.f32 %v1910, %v187
        %v1913 = vmul.f32 %v1910, %v188
        %v1917 = vrot.slane %v1911, 5
        %v1918 = vrot.slane %v1912, 5
        %v1919 = vsel %vm866, %v1917, %v1918
        %v1920 = vrot.slane %v1913, 5
        %v1921 = vsel %vm866, %v1918, %v1920
        %1922 = vrot.lane.b32.xlu0 %v1919, 123
        %v1923 = vpop.permute.xlu0 %1922
        %1924 = vrot.lane.b32.xlu0 %v1921, 123
        %v1925 = vpop.permute.xlu0 %1924
        %v1928 = vadd.f32 %v1907, %v1923
        %v1929 = vadd.f32 %v1908, %v1925
        %s1930 = sld [smem:[#allocation2 + $0x5a]]
        %v1931 = vstv %s1930
        %v1932 = vmul.f32 %v1931, %v186
        %v1933 = vmul.f32 %v1931, %v187
        %v1934 = vmul.f32 %v1931, %v188
        %v1938 = vrot.slane %v1932, 5
        %v1939 = vrot.slane %v1933, 5
        %v1940 = vsel %vm866, %v1938, %v1939
        %v1941 = vrot.slane %v1934, 5
        %v1942 = vsel %vm866, %v1939, %v1941
        %1943 = vrot.lane.b32.xlu0 %v1940, 122
        %v1944 = vpop.permute.xlu0 %1943
        %1945 = vrot.lane.b32.xlu0 %v1942, 122
        %v1946 = vpop.permute.xlu0 %1945
        %v1949 = vadd.f32 %v1928, %v1944
        %v1950 = vadd.f32 %v1929, %v1946
        %s1951 = sld [smem:[#allocation2 + $0x5b]]
        %v1952 = vstv %s1951
        %v1953 = vmul.f32 %v1952, %v186
        %v1954 = vmul.f32 %v1952, %v187
        %v1955 = vmul.f32 %v1952, %v188
        %v1959 = vrot.slane %v1953, 6
        %v1960 = vrot.slane %v1954, 6
        %v1961 = vsel %vm1010, %v1959, %v1960
        %v1962 = vrot.slane %v1955, 6
        %v1963 = vsel %vm1010, %v1960, %v1962
        %v1966 = vadd.f32 %v1949, %v1961
        %v1967 = vadd.f32 %v1950, %v1963
        %s1968 = sld [smem:[#allocation2 + $0x5c]]
        %v1969 = vstv %s1968
        %v1970 = vmul.f32 %v1969, %v186
        %v1971 = vmul.f32 %v1969, %v187
        %v1972 = vmul.f32 %v1969, %v188
        %v1976 = vrot.slane %v1970, 6
        %v1977 = vrot.slane %v1971, 6
        %v1978 = vsel %vm1010, %v1976, %v1977
        %v1979 = vrot.slane %v1972, 6
        %v1980 = vsel %vm1010, %v1977, %v1979
        %1981 = vrot.lane.b32.xlu0 %v1978, 127
        %v1982 = vpop.permute.xlu0 %1981
        %1983 = vrot.lane.b32.xlu0 %v1980, 127
        %v1984 = vpop.permute.xlu0 %1983
        %v1987 = vadd.f32 %v1966, %v1982
        %v1988 = vadd.f32 %v1967, %v1984
        %s1989 = sld [smem:[#allocation2 + $0x5d]]
        %v1990 = vstv %s1989
        %v1991 = vmul.f32 %v1990, %v186
        %v1992 = vmul.f32 %v1990, %v187
        %v1993 = vmul.f32 %v1990, %v188
        %v1997 = vrot.slane %v1991, 6
        %v1998 = vrot.slane %v1992, 6
        %v1999 = vsel %vm1010, %v1997, %v1998
        %v2000 = vrot.slane %v1993, 6
        %v2001 = vsel %vm1010, %v1998, %v2000
        %2002 = vrot.lane.b32.xlu0 %v1999, 126
        %v2003 = vpop.permute.xlu0 %2002
        %2004 = vrot.lane.b32.xlu0 %v2001, 126
        %v2005 = vpop.permute.xlu0 %2004
        %v2008 = vadd.f32 %v1987, %v2003
        %v2009 = vadd.f32 %v1988, %v2005
        %s2010 = sld [smem:[#allocation2 + $0x5e]]
        %v2011 = vstv %s2010
        %v2012 = vmul.f32 %v2011, %v186
        %v2013 = vmul.f32 %v2011, %v187
        %v2014 = vmul.f32 %v2011, %v188
        %v2018 = vrot.slane %v2012, 6
        %v2019 = vrot.slane %v2013, 6
        %v2020 = vsel %vm1010, %v2018, %v2019
        %v2021 = vrot.slane %v2014, 6
        %v2022 = vsel %vm1010, %v2019, %v2021
        %2023 = vrot.lane.b32.xlu0 %v2020, 125
        %v2024 = vpop.permute.xlu0 %2023
        %2025 = vrot.lane.b32.xlu0 %v2022, 125
        %v2026 = vpop.permute.xlu0 %2025
        %v2029 = vadd.f32 %v2008, %v2024
        %v2030 = vadd.f32 %v2009, %v2026
        %s2031 = sld [smem:[#allocation2 + $0x5f]]
        %v2032 = vstv %s2031
        %v2033 = vmul.f32 %v2032, %v186
        %v2034 = vmul.f32 %v2032, %v187
        %v2035 = vmul.f32 %v2032, %v188
        %v2039 = vrot.slane %v2033, 6
        %v2040 = vrot.slane %v2034, 6
        %v2041 = vsel %vm1010, %v2039, %v2040
        %v2042 = vrot.slane %v2035, 6
        %v2043 = vsel %vm1010, %v2040, %v2042
        %2044 = vrot.lane.b32.xlu0 %v2041, 124
        %v2045 = vpop.permute.xlu0 %2044
        %2046 = vrot.lane.b32.xlu0 %v2043, 124
        %v2047 = vpop.permute.xlu0 %2046
        %v2050 = vadd.f32 %v2029, %v2045
        %v2051 = vadd.f32 %v2030, %v2047
        %s2052 = sld [smem:[#allocation2 + $0x60]]
        %v2053 = vstv %s2052
        %v2054 = vmul.f32 %v2053, %v186
        %v2055 = vmul.f32 %v2053, %v187
        %v2056 = vmul.f32 %v2053, %v188
        %v2060 = vrot.slane %v2054, 6
        %v2061 = vrot.slane %v2055, 6
        %v2062 = vsel %vm1010, %v2060, %v2061
        %v2063 = vrot.slane %v2056, 6
        %v2064 = vsel %vm1010, %v2061, %v2063
        %2065 = vrot.lane.b32.xlu0 %v2062, 123
        %v2066 = vpop.permute.xlu0 %2065
        %2067 = vrot.lane.b32.xlu0 %v2064, 123
        %v2068 = vpop.permute.xlu0 %2067
        %v2071 = vadd.f32 %v2050, %v2066
        %v2072 = vadd.f32 %v2051, %v2068
        %s2073 = sld [smem:[#allocation2 + $0x61]]
        %v2074 = vstv %s2073
        %v2075 = vmul.f32 %v2074, %v186
        %v2076 = vmul.f32 %v2074, %v187
        %v2077 = vmul.f32 %v2074, %v188
        %v2081 = vrot.slane %v2075, 6
        %v2082 = vrot.slane %v2076, 6
        %v2083 = vsel %vm1010, %v2081, %v2082
        %v2084 = vrot.slane %v2077, 6
        %v2085 = vsel %vm1010, %v2082, %v2084
        %2086 = vrot.lane.b32.xlu0 %v2083, 122
        %v2087 = vpop.permute.xlu0 %2086
        %2088 = vrot.lane.b32.xlu0 %v2085, 122
        %v2089 = vpop.permute.xlu0 %2088
        %v2092 = vadd.f32 %v2071, %v2087
        %v2093 = vadd.f32 %v2072, %v2089
        %v2094 = vsub.f32 0.0, %v2092
        %v2095 = vsub.f32 0.0, %v2093
        %v2096 = vmul.f32 %v2094, 1.442695
        %v2097 = vpow.pop %v2096
        %v2098 = vmul.f32 %v2095, 1.442695
        %v2099 = vpow.pop %v2098
        %v2100 = vadd.f32 %v2097, 1.0
        %v2101 = vadd.f32 %v2099, 1.0
        %v2102 = vrcp.pop %v2100
        %v2103 = vmul.f32 1.0, %v2102
        %v2104 = vrcp.pop %v2101
        %v2105 = vmul.f32 1.0, %v2104
        %vm2106 = vcmask 130048
        %2107 = vst.msk [vmem:[%s150] sm:$0xff] %vm2106, %v2103
        %2108 = vst.msk [vmem:[%s150 + $0x8] sm:$0xff] %vm2106, %v2105
        %s2109 = sand.u32 %s72, 1
        %s2110 = scalar_lea.sflag [#allocation3], %s2109
        %s2111 = sand.u32 %s72, 1
        %s2112 = smul.addr %s2111, 16
        %s2113 = scalar_lea.vmem [#allocation5], %s2112
        // Predicated region
        $region33: #{tpu_custom_call.1} parent=27 // pred_check
          %p2114 = pneg %p82
        $region34: #{tpu_custom_call.1} parent=27 // pred_check_branch
          %2116 = sbr.rel (%p2114) target = $region36
        $region35: #{tpu_custom_call.1} parent=27 // pred_region
          %s2118 = ssub.s32 256, 256
          %2119 = vsyncadd %s2110, %s2118
          %s2120 = smul.addr %s17, 2
          %s2121 = smul.addr %s2120, 128
          %s2122 = scalar_lea.hbm %s2, %s2121
          %s2123 = sshll.u32 %s2113, 4
          %s2124 = int_to_ptr.vmem [resolvable:$true] %s2123
          %2129 = dma.vmem_to_hbm [thread:$0]  %s2124, 256, %s2122, %s2110, 128, 128, 8
        $region36: #{tpu_custom_call.1} parent=27 // pred_fallthru
          _
      $region28: #{tpu_custom_call.1} parent=5 // pred_fallthru
        _
      %p2130 = scmp.le.s32.totalorder 2, %s12
      // Predicated region
      $region37: #{tpu_custom_call.1} parent=5 // pred_check
        %p2131 = pneg %p2130
      $region38: #{tpu_custom_call.1} parent=5 // pred_check_branch
        %2133 = sbr.rel (%p2131) target = $region40
      $region39: #{tpu_custom_call.1} parent=5 // pred_region
        %s2134 = ssub.s32 %s12, 2
        // Predicated region
        $region41: #{tpu_custom_call.1} parent=39 // pred_check
          %p2135 = pneg %p88
        $region42: #{tpu_custom_call.1} parent=39 // pred_check_branch
          %2137 = sbr.rel (%p2135) target = $region44
        $region43: #{tpu_custom_call.1} parent=39 // pred_region
          %s2138 = sand.u32 %s73, 1
          %s2139 = scalar_lea.sflag [#allocation3], %s2138
          %s2140 = sand.u32 %s73, 1
          %s2141 = smul.addr %s2140, 16
          %s2142 = scalar_lea.vmem [#allocation5], %s2141
          %2143 = dma.done %s2139, 256
        $region44: #{tpu_custom_call.1} parent=39 // pred_fallthru
          _
      $region40: #{tpu_custom_call.1} parent=5 // pred_fallthru
        _
    $region6: #{tpu_custom_call.1} parent=1 // loop_footer
      %s16 = sadd.s32 1, %s12
    $region7: #{tpu_custom_call.1} parent=1 // loop_footer_branch
      %11 = sbr.rel target = $region3
    $region8: #{tpu_custom_call.1} parent=1 // loop_exit
      _
    %2144 = vsyncpa [#allocation3], 1
    %s2145 = scalar_lea.sflag [#allocation3], 1
    %2146 = vsyncpa %s2145, 1
    %2147 = vsyncpa [#allocation4], 1
    %s2148 = scalar_lea.sflag [#allocation4], 1
    %2149 = vsyncpa %s2148, 1

</llo_original>
